<compile_context>
chip_gen: v6e
topology: v6e:2x2x1
jax: 0.10.0
libtpu: 0.0.40
codegen_flags: <defaults>
</compile_context>

<pallas_src>
import functools

import jax
import jax.numpy as jnp
from jax import lax
from jax.experimental import pallas as pl
from jax.experimental.pallas import tpu as pltpu


def _layernorm(v, gamma, beta, eps=1e-5):
    mu = jnp.mean(v, axis=-1, keepdims=True)
    var = jnp.mean((v - mu) ** 2, axis=-1, keepdims=True)
    return (v - mu) * lax.rsqrt(var + eps) * gamma + beta


def block_kernel(x_ref,
                 wqkv_ref, wproj_ref, bproj_ref,
                 w1_ref, b1_ref, w2_ref, b2_ref,
                 g1_ref, be1_ref, g2_ref, be2_ref, g3_ref, be3_ref,
                 out_ref,
                 qkv_scr, att_scr, x2_scr, h2_scr, ff_scr,
                 *, n_head):
    f32 = jnp.float32
    bf16 = jnp.bfloat16
    j = pl.program_id(1)          # FFN hidden-block index (innermost grid axis)

    T, C = x_ref.shape
    hs = C // n_head

    # ---- first hidden-block step: ln1 + attention + residual + ln2 ----------
    @pl.when(j == 0)
    def attention_stage():
        x = x_ref[...].astype(f32)                                   # (T, C) f32
        h1 = _layernorm(x, g1_ref[...], be1_ref[...]).astype(bf16)

        # Fused QKV: one full-width (T,C)@(C,3C) MXU matmul. The hs^-0.5 scale
        # is already folded into the Q columns at prep time.
        qkv_scr[...] = jnp.dot(h1, wqkv_ref[...],
                               preferred_element_type=f32).astype(bf16)

        # Causal mask from tiny (T,1)/(1,T) iotas (no (T,T) int32 tensors).
        row = lax.broadcasted_iota(jnp.int32, (T, 1), 0)
        col = lax.broadcasted_iota(jnp.int32, (1, T), 1)

        # Per-head attention; outputs land lane-contiguously in att_scr so the
        # output projection below is a single full-width (T,C)@(C,C) matmul.
        # TODO(synk): for large n_head / long T switch this static unroll to a
        # KV-tiled (flash-style) loop with a parallel T axis for v7x megacore.
        for h in range(n_head):
            off = h * hs
            q = qkv_scr[:, off:off + hs]                     # bf16, pre-scaled
            k = qkv_scr[:, C + off:C + off + hs]
            v = qkv_scr[:, 2 * C + off:2 * C + off + hs]
            # q @ k^T via dot_general contracting head dims (no transpose copy).
            s = lax.dot_general(q, k, (((1,), (1,)), ((), ())),
                                preferred_element_type=f32)  # (T, T) f32
            s = jnp.where(col <= row, s, -1e30)
            s = s - jnp.max(s, axis=-1, keepdims=True)
            p = jnp.exp(s)
            # TODO(synk): on v6e/v7x the exp could run in bf16 for ~2x EUP rate.
            inv_l = pl.reciprocal(jnp.sum(p, axis=-1, keepdims=True), approx=True)
            o = jnp.dot(p.astype(bf16), v, preferred_element_type=f32) * inv_l
            att_scr[:, off:off + hs] = o.astype(bf16)

        sa = jnp.dot(att_scr[...], wproj_ref[...], preferred_element_type=f32)
        x2 = x + sa + bproj_ref[...]
        x2_scr[...] = x2
        h2_scr[...] = _layernorm(x2, g2_ref[...], be2_ref[...]).astype(bf16)
        ff_scr[...] = jnp.zeros_like(ff_scr)

    # ---- every step: one streamed FFN hidden block, ReLU fused into W2 accum -
    a = jnp.dot(h2_scr[...], w1_ref[...], preferred_element_type=f32) + b1_ref[...]
    a = jnp.maximum(a, 0.0).astype(bf16)            # (T, hb) never leaves VMEM
    ff_scr[...] += jnp.dot(a, w2_ref[...], preferred_element_type=f32)

    # ---- last hidden-block step: FFN residual + ln3 --------------------------
    @pl.when(j == pl.num_programs(1) - 1)
    def finalize_stage():
        x3 = x2_scr[...] + ff_scr[...] + b2_ref[...]
        out_ref[...] = _layernorm(x3, g3_ref[...], be3_ref[...]).astype(out_ref.dtype)


def _physical_vmem_bytes():
    # Narrow hardware query with a conservative fallback (64 MiB = v7x per-TC).
    try:
        return int(pltpu.get_tpu_info().vmem_capacity_bytes)
    except Exception:
        return 64 * 1024 * 1024


def _vmem_limit_bytes(T, C, hb):
    """Scoped-VMEM request: rough resident footprint, clamped to ~90% of the
    physical per-core VMEM (64 MiB on v7x, 128 MiB on v5e/v6e)."""
    cap = (_physical_vmem_bytes() * 9) // 10
    bf, f4 = 2, 4
    attn_w = (3 * C * C + C * C) * bf * 2              # wqkv + wproj (2x buffered)
    ffn_w = 2 * (2 * C * hb + hb) * bf                 # streamed W1/W2 blocks, 2x buffered
    io = 2 * 2 * T * C * f4                            # x + out slabs, double-buffered
    scratch = 5 * T * C * bf + 3 * T * C * f4          # qkv/att bf16 + x2/ff f32 scratch
    live = (2 * T * T + 4 * T * hb + 4 * T * C) * f4   # in-flight intermediates
    small = 32 * C * f4
    est = attn_w + ffn_w + io + scratch + live + small
    return int(min(max(est, 32 * 1024 * 1024), cap))


def prepare_params(params, n_head, hidden_block=512):
    """One-time weight preparation (hoisted out of the per-step wrapper):
    fuse Q/K/V, fold the softmax scale into Q, cast matmul weights to bf16,
    pad the FFN hidden dim to a multiple of 128 and pick a 128-multiple block."""
    (wq, wk, wv, wproj, bproj, w1, b1, w2, b2,
     g1, be1, g2, be2, g3, be3) = params
    C = wq.shape[0]
    H = w1.shape[1]
    hs = C // n_head
    bf16 = jnp.bfloat16

    wqkv = jnp.concatenate([wq * (float(hs) ** -0.5), wk, wv], axis=1).astype(bf16)
    wprojb = wproj.astype(bf16)

    Hp = ((H + 127) // 128) * 128
    hb = max((min(hidden_block, Hp) // 128) * 128, 128)
    while Hp % hb:
        hb -= 128
    nhb = Hp // hb

    w1p = jnp.zeros((C, Hp), w1.dtype).at[:, :H].set(w1).astype(bf16)
    b1p = jnp.zeros((1, Hp), b1.dtype).at[:, :H].set(b1)
    w2p = jnp.zeros((Hp, C), w2.dtype).at[:H, :].set(w2).astype(bf16)

    return dict(wqkv=wqkv, wproj=wprojb, bproj=bproj,
                w1=w1p, b1=b1p, w2=w2p, b2=b2,
                g1=g1, be1=be1, g2=g2, be2=be2, g3=g3, be3=be3,
                n_head=n_head, hb=hb, nhb=nhb)


def transformer_block(x, prepared):
    B, T, C = x.shape
    n_head = prepared["n_head"]
    hb, nhb = prepared["hb"], prepared["nhb"]
    bf16 = jnp.bfloat16
    f32 = jnp.float32

    def const2(b, j):
        return (0, 0)

    in_specs = [
        pl.BlockSpec((None, T, C), lambda b, j: (b, 0, 0)),   # x
        pl.BlockSpec((C, 3 * C), const2),                     # wqkv (resident)
        pl.BlockSpec((C, C), const2),                         # wproj (resident)
        pl.BlockSpec((1, C), const2),                         # bproj
        pl.BlockSpec((C, hb), lambda b, j: (0, j)),           # W1 block (streamed)
        pl.BlockSpec((1, hb), lambda b, j: (0, j)),           # b1 block (streamed)
        pl.BlockSpec((hb, C), lambda b, j: (j, 0)),           # W2 block (streamed)
        pl.BlockSpec((1, C), const2),                         # b2
        pl.BlockSpec((1, C), const2), pl.BlockSpec((1, C), const2),   # ln1
        pl.BlockSpec((1, C), const2), pl.BlockSpec((1, C), const2),   # ln2
        pl.BlockSpec((1, C), const2), pl.BlockSpec((1, C), const2),   # ln3
    ]
    out_spec = pl.BlockSpec((None, T, C), lambda b, j: (b, 0, 0))

    # TODO(synk): cast x/out to bf16 at this boundary to halve slab DMA bytes;
    # kept f32 here to preserve residual-stream accuracy at small scales.
    kernel = functools.partial(block_kernel, n_head=n_head)
    return pl.pallas_call(
        kernel,
        out_shape=jax.ShapeDtypeStruct((B, T, C), x.dtype),
        grid_spec=pltpu.PrefetchScalarGridSpec(
            num_scalar_prefetch=0,
            grid=(B, nhb),
            in_specs=in_specs,
            out_specs=out_spec,
            scratch_shapes=[
                pltpu.VMEM((T, 3 * C), bf16),     # fused QKV
                pltpu.VMEM((T, C), bf16),         # per-head attention concat
                pltpu.VMEM((T, C), f32),          # x2 residual (resident across j)
                pltpu.VMEM((T, C), bf16),         # ln2(x2)    (resident across j)
                pltpu.VMEM((T, C), f32),          # FFN accumulator
            ],
        ),
        compiler_params=pltpu.CompilerParams(
            dimension_semantics=("parallel", "arbitrary"),
            vmem_limit_bytes=_vmem_limit_bytes(T, C, hb),
        ),
    )(x, prepared["wqkv"], prepared["wproj"], prepared["bproj"],
      prepared["w1"], prepared["b1"], prepared["w2"], prepared["b2"],
      prepared["g1"], prepared["be1"], prepared["g2"], prepared["be2"],
      prepared["g3"], prepared["be3"])


def init_params(key, n_embd, n_head):
    C, H = n_embd, 4 * n_embd
    ks = jax.random.split(key, 8)
    s = 0.02
    wq = s * jax.random.normal(ks[0], (C, C), jnp.float32)      # (in, out)
    wk = s * jax.random.normal(ks[1], (C, C), jnp.float32)
    wv = s * jax.random.normal(ks[2], (C, C), jnp.float32)
    wproj = s * jax.random.normal(ks[3], (C, C), jnp.float32)
    bproj = s * jax.random.normal(ks[4], (1, C), jnp.float32)
    w1 = s * jax.random.normal(ks[5], (C, H), jnp.float32)
    b1 = s * jax.random.normal(ks[6], (1, H), jnp.float32)
    w2 = s * jax.random.normal(ks[7], (H, C), jnp.float32)
    b2 = jnp.zeros((1, C), jnp.float32)
    g1 = jnp.ones((1, C), jnp.float32); be1 = jnp.zeros((1, C), jnp.float32)
    g2 = jnp.ones((1, C), jnp.float32); be2 = jnp.zeros((1, C), jnp.float32)
    g3 = jnp.ones((1, C), jnp.float32); be3 = jnp.zeros((1, C), jnp.float32)
    return (wq, wk, wv, wproj, bproj, w1, b1, w2, b2,
            g1, be1, g2, be2, g3, be3)


def reference_block(x, params, n_head):
    (wq, wk, wv, wproj, bproj, w1, b1, w2, b2,
     g1, be1, g2, be2, g3, be3) = params
    B, T, C = x.shape
    hs = C // n_head

    def ln(v, g, b):
        mu = jnp.mean(v, -1, keepdims=True)
        var = jnp.mean((v - mu) ** 2, -1, keepdims=True)
        return (v - mu) / jnp.sqrt(var + 1e-5) * g + b

    h1 = ln(x, g1, be1)
    q = h1 @ wq
    k = h1 @ wk
    v = h1 @ wv
    qh = q.reshape(B, T, n_head, hs).transpose(0, 2, 1, 3)
    kh = k.reshape(B, T, n_head, hs).transpose(0, 2, 1, 3)
    vh = v.reshape(B, T, n_head, hs).transpose(0, 2, 1, 3)
    wei = jnp.einsum("bhtd,bhsd->bhts", qh, kh) * (hs ** -0.5)
    mask = jnp.tril(jnp.ones((T, T), bool))
    wei = jnp.where(mask, wei, -jnp.inf)
    wei = jax.nn.softmax(wei, axis=-1)
    att = jnp.einsum("bhts,bhsd->bhtd", wei, vh).transpose(0, 2, 1, 3).reshape(B, T, C)
    x = x + att @ wproj + bproj
    h2 = ln(x, g2, be2)
    ff = jnp.maximum(h2 @ w1 + b1, 0.0) @ w2 + b2
    x = x + ff
    return ln(x, g3, be3)


if __name__ == "__main__":
    B, T, C, n_head = 2, 8, 32, 4   # block_size = T = 8, head_size = 8
    key = jax.random.PRNGKey(0)
    kx, kp = jax.random.split(key)
    x = jax.random.normal(kx, (B, T, C), jnp.float32)
    params = init_params(kp, C, n_head)

    prepared = prepare_params(params, n_head)       # one-time weight prep
    out = transformer_block(x, prepared)
    out = jax.block_until_ready(out)

    ref = reference_block(x, params, n_head)
    assert out.shape == (B, T, C)
    # bf16 matmul operands -> looser tolerance than a pure-f32 implementation.
    err = float(jnp.max(jnp.abs(out - ref)))
    assert jnp.allclose(out, ref, atol=2e-2, rtol=2e-2), err
    print("KERNEL_OK")
</pallas_src>

<mosaic_0001>
module attributes {stable_mosaic.version = 11 : i64} {
  func.func @block_kernel(%arg0: i32, %arg1: i32, %arg2: memref<1x8x32xf32, #tpu.memory_space<vmem>>, %arg3: memref<32x96xbf16, #tpu.memory_space<vmem>>, %arg4: memref<32x32xbf16, #tpu.memory_space<vmem>>, %arg5: memref<1x32xf32, #tpu.memory_space<vmem>>, %arg6: memref<32x128xbf16, #tpu.memory_space<vmem>>, %arg7: memref<1x128xf32, #tpu.memory_space<vmem>>, %arg8: memref<128x32xbf16, #tpu.memory_space<vmem>>, %arg9: memref<1x32xf32, #tpu.memory_space<vmem>>, %arg10: memref<1x32xf32, #tpu.memory_space<vmem>>, %arg11: memref<1x32xf32, #tpu.memory_space<vmem>>, %arg12: memref<1x32xf32, #tpu.memory_space<vmem>>, %arg13: memref<1x32xf32, #tpu.memory_space<vmem>>, %arg14: memref<1x32xf32, #tpu.memory_space<vmem>>, %arg15: memref<1x32xf32, #tpu.memory_space<vmem>>, %arg16: memref<1x8x32xf32, #tpu.memory_space<vmem>>, %arg17: memref<8x96xbf16, #tpu.memory_space<vmem>>, %arg18: memref<8x32xbf16, #tpu.memory_space<vmem>>, %arg19: memref<8x32xf32, #tpu.memory_space<vmem>>, %arg20: memref<8x32xbf16, #tpu.memory_space<vmem>>, %arg21: memref<8x32xf32, #tpu.memory_space<vmem>>) attributes {dimension_semantics = [#tpu.dimension_semantics<parallel>, #tpu.dimension_semantics<arbitrary>], iteration_bounds = array<i64: 2, 1>, scalar_prefetch = 0 : i64, scratch_operands = 5 : i64, tpu.core_type = #tpu.core_type<tc>, window_params = [{transform_indices = @transform_0, window_bounds = array<i64: 1, 8, 32>}, {pipeline_mode = #tpu.pipeline_mode<synchronous>, transform_indices = @transform_1, window_bounds = array<i64: 32, 96>}, {pipeline_mode = #tpu.pipeline_mode<synchronous>, transform_indices = @transform_2, window_bounds = array<i64: 32, 32>}, {pipeline_mode = #tpu.pipeline_mode<synchronous>, transform_indices = @transform_3, window_bounds = array<i64: 1, 32>}, {transform_indices = @transform_4, window_bounds = array<i64: 32, 128>}, {transform_indices = @transform_5, window_bounds = array<i64: 1, 128>}, {transform_indices = @transform_6, window_bounds = array<i64: 128, 32>}, {pipeline_mode = #tpu.pipeline_mode<synchronous>, transform_indices = @transform_7, window_bounds = array<i64: 1, 32>}, {pipeline_mode = #tpu.pipeline_mode<synchronous>, transform_indices = @transform_8, window_bounds = array<i64: 1, 32>}, {pipeline_mode = #tpu.pipeline_mode<synchronous>, transform_indices = @transform_9, window_bounds = array<i64: 1, 32>}, {pipeline_mode = #tpu.pipeline_mode<synchronous>, transform_indices = @transform_10, window_bounds = array<i64: 1, 32>}, {pipeline_mode = #tpu.pipeline_mode<synchronous>, transform_indices = @transform_11, window_bounds = array<i64: 1, 32>}, {pipeline_mode = #tpu.pipeline_mode<synchronous>, transform_indices = @transform_12, window_bounds = array<i64: 1, 32>}, {pipeline_mode = #tpu.pipeline_mode<synchronous>, transform_indices = @transform_13, window_bounds = array<i64: 1, 32>}, {transform_indices = @transform_14, window_bounds = array<i64: 1, 8, 32>}]} {
    %c0_i32 = arith.constant 0 : i32
    %0 = arith.cmpi eq, %arg1, %c0_i32 : i32
    %1 = arith.extui %0 : i1 to i32
    %c0_i32_0 = arith.constant 0 : i32
    %2 = arith.cmpi ne, %1, %c0_i32_0 : i32
    scf.if %2 {
      %c0_16 = arith.constant 0 : index
      %c0_17 = arith.constant 0 : index
      %c0_18 = arith.constant 0 : index
      %20 = vector.load %arg2[%c0_16, %c0_17, %c0_18] : memref<1x8x32xf32, #tpu.memory_space<vmem>>, vector<1x8x32xf32>
      %21 = vector.shape_cast %20 : vector<1x8x32xf32> to vector<8x32xf32>
      %c0_19 = arith.constant 0 : index
      %c0_20 = arith.constant 0 : index
      %22 = vector.load %arg10[%c0_19, %c0_20] : memref<1x32xf32, #tpu.memory_space<vmem>>, vector<1x32xf32>
      %c0_21 = arith.constant 0 : index
      %c0_22 = arith.constant 0 : index
      %23 = vector.load %arg11[%c0_21, %c0_22] : memref<1x32xf32, #tpu.memory_space<vmem>>, vector<1x32xf32>
      %cst_23 = arith.constant dense<0.000000e+00> : vector<8xf32>
      %24 = vector.multi_reduction <add>, %21, %cst_23 [1] : vector<8x32xf32> to vector<8xf32>
      %25 = vector.shape_cast %24 : vector<8xf32> to vector<8x1xf32>
      %cst_24 = arith.constant 3.200000e+01 : f32
      %26 = vector.broadcast %cst_24 : f32 to vector<8x1xf32>
      %27 = arith.divf %25, %26 : vector<8x1xf32>
      %28 = vector.broadcast %27 : vector<8x1xf32> to vector<8x32xf32>
      %29 = arith.subf %21, %28 : vector<8x32xf32>
      %30 = arith.mulf %29, %29 : vector<8x32xf32>
      %cst_25 = arith.constant dense<0.000000e+00> : vector<8xf32>
      %31 = vector.multi_reduction <add>, %30, %cst_25 [1] : vector<8x32xf32> to vector<8xf32>
      %32 = vector.shape_cast %31 : vector<8xf32> to vector<8x1xf32>
      %cst_26 = arith.constant 3.200000e+01 : f32
      %33 = vector.broadcast %cst_26 : f32 to vector<8x1xf32>
      %34 = arith.divf %32, %33 : vector<8x1xf32>
      %35 = vector.broadcast %27 : vector<8x1xf32> to vector<8x32xf32>
      %36 = arith.subf %21, %35 : vector<8x32xf32>
      %cst_27 = arith.constant 9.99999974E-6 : f32
      %37 = vector.broadcast %cst_27 : f32 to vector<8x1xf32>
      %38 = arith.addf %34, %37 : vector<8x1xf32>
      %39 = math.rsqrt %38 : vector<8x1xf32>
      %40 = vector.broadcast %39 : vector<8x1xf32> to vector<8x32xf32>
      %41 = arith.mulf %36, %40 : vector<8x32xf32>
      %42 = vector.broadcast %22 : vector<1x32xf32> to vector<8x32xf32>
      %43 = arith.mulf %41, %42 : vector<8x32xf32>
      %44 = vector.broadcast %23 : vector<1x32xf32> to vector<8x32xf32>
      %45 = arith.addf %43, %44 : vector<8x32xf32>
      %46 = arith.truncf %45 : vector<8x32xf32> to vector<8x32xbf16>
      %c0_28 = arith.constant 0 : index
      %c0_29 = arith.constant 0 : index
      %47 = vector.load %arg3[%c0_28, %c0_29] : memref<32x96xbf16, #tpu.memory_space<vmem>>, vector<32x96xbf16>
      %cst_30 = arith.constant dense<0.000000e+00> : vector<8x96xf32>
      %48 = tpu.matmul %46, %47, %cst_30 {dimension_numbers = #tpu.dot_dimension_numbers<[1], [0], [0], [1], [0, 0, 1, 1], [], []>} : vector<8x32xbf16>, vector<32x96xbf16>, vector<8x96xf32> -> vector<8x96xf32>
      %49 = arith.truncf %48 : vector<8x96xf32> to vector<8x96xbf16>
      %c0_31 = arith.constant 0 : index
      %c0_32 = arith.constant 0 : index
      %50 = vector.load %arg17[%c0_31, %c0_32] : memref<8x96xbf16, #tpu.memory_space<vmem>>, vector<8x96xbf16>
      tpu.vector_store %arg17[%c0_31, %c0_32], %49 {strides = array<i32>} : memref<8x96xbf16, #tpu.memory_space<vmem>>, vector<8x96xbf16>,
      %51 = tpu.iota {dimensions = array<i32: 0>} : vector<8x1xi32>
      %52 = tpu.iota {dimensions = array<i32: 1>} : vector<1x8xi32>
      %c0_33 = arith.constant 0 : index
      %c0_34 = arith.constant 0 : index
      %53 = vector.load %arg17[%c0_33, %c0_34] : memref<8x96xbf16, #tpu.memory_space<vmem>>, vector<8x8xbf16>
      %c0_35 = arith.constant 0 : index
      %c32 = arith.constant 32 : index
      %54 = vector.load %arg17[%c0_35, %c32] : memref<8x96xbf16, #tpu.memory_space<vmem>>, vector<8x8xbf16>
      %c0_36 = arith.constant 0 : index
      %c64 = arith.constant 64 : index
      %55 = vector.load %arg17[%c0_36, %c64] : memref<8x96xbf16, #tpu.memory_space<vmem>>, vector<8x8xbf16>
      %cst_37 = arith.constant dense<0.000000e+00> : vector<8x8xf32>
      %56 = tpu.matmul %53, %54, %cst_37 {dimension_numbers = #tpu.dot_dimension_numbers<[1], [1], [0], [0], [0, 0, 1, 0], [], []>} : vector<8x8xbf16>, vector<8x8xbf16>, vector<8x8xf32> -> vector<8x8xf32>
      %57 = vector.broadcast %52 : vector<1x8xi32> to vector<8x8xi32>
      %58 = vector.broadcast %51 : vector<8x1xi32> to vector<8x8xi32>
      %59 = arith.cmpi sle, %57, %58 : vector<8x8xi32>
      %cst_38 = arith.constant -1.000000e+30 : f32
      %60 = vector.broadcast %cst_38 : f32 to vector<8x8xf32>
      %61 = arith.select %59, %56, %60 : vector<8x8xi1>, vector<8x8xf32>
      %cst_39 = arith.constant dense<0xFF800000> : vector<8xf32>
      %62 = vector.multi_reduction <maximumf>, %61, %cst_39 [1] : vector<8x8xf32> to vector<8xf32>
      %63 = vector.shape_cast %62 : vector<8xf32> to vector<8x1xf32>
      %64 = vector.broadcast %63 : vector<8x1xf32> to vector<8x8xf32>
      %65 = arith.subf %61, %64 : vector<8x8xf32>
      %66 = math.exp %65 : vector<8x8xf32>
      %cst_40 = arith.constant dense<0.000000e+00> : vector<8xf32>
      %67 = vector.multi_reduction <add>, %66, %cst_40 [1] : vector<8x8xf32> to vector<8xf32>
      %68 = vector.shape_cast %67 : vector<8xf32> to vector<8x1xf32>
      %69 = tpu.reciprocal %68 {approx = true} : vector<8x1xf32> -> vector<8x1xf32>
      %70 = arith.truncf %66 : vector<8x8xf32> to vector<8x8xbf16>
      %cst_41 = arith.constant dense<0.000000e+00> : vector<8x8xf32>
      %71 = tpu.matmul %70, %55, %cst_41 {dimension_numbers = #tpu.dot_dimension_numbers<[1], [0], [0], [1], [0, 0, 1, 1], [], []>} : vector<8x8xbf16>, vector<8x8xbf16>, vector<8x8xf32> -> vector<8x8xf32>
      %72 = vector.broadcast %69 : vector<8x1xf32> to vector<8x8xf32>
      %73 = arith.mulf %71, %72 : vector<8x8xf32>
      %74 = arith.truncf %73 : vector<8x8xf32> to vector<8x8xbf16>
      %c0_42 = arith.constant 0 : index
      %c0_43 = arith.constant 0 : index
      %75 = vector.load %arg18[%c0_42, %c0_43] : memref<8x32xbf16, #tpu.memory_space<vmem>>, vector<8x8xbf16>
      tpu.vector_store %arg18[%c0_42, %c0_43], %74 {strides = array<i32>} : memref<8x32xbf16, #tpu.memory_space<vmem>>, vector<8x8xbf16>,
      %c0_44 = arith.constant 0 : index
      %c8 = arith.constant 8 : index
      %76 = vector.load %arg17[%c0_44, %c8] : memref<8x96xbf16, #tpu.memory_space<vmem>>, vector<8x8xbf16>
      %c0_45 = arith.constant 0 : index
      %c40 = arith.constant 40 : index
      %77 = vector.load %arg17[%c0_45, %c40] : memref<8x96xbf16, #tpu.memory_space<vmem>>, vector<8x8xbf16>
      %c0_46 = arith.constant 0 : index
      %c72 = arith.constant 72 : index
      %78 = vector.load %arg17[%c0_46, %c72] : memref<8x96xbf16, #tpu.memory_space<vmem>>, vector<8x8xbf16>
      %cst_47 = arith.constant dense<0.000000e+00> : vector<8x8xf32>
      %79 = tpu.matmul %76, %77, %cst_47 {dimension_numbers = #tpu.dot_dimension_numbers<[1], [1], [0], [0], [0, 0, 1, 0], [], []>} : vector<8x8xbf16>, vector<8x8xbf16>, vector<8x8xf32> -> vector<8x8xf32>
      %80 = vector.broadcast %52 : vector<1x8xi32> to vector<8x8xi32>
      %81 = vector.broadcast %51 : vector<8x1xi32> to vector<8x8xi32>
      %82 = arith.cmpi sle, %80, %81 : vector<8x8xi32>
      %cst_48 = arith.constant -1.000000e+30 : f32
      %83 = vector.broadcast %cst_48 : f32 to vector<8x8xf32>
      %84 = arith.select %82, %79, %83 : vector<8x8xi1>, vector<8x8xf32>
      %cst_49 = arith.constant dense<0xFF800000> : vector<8xf32>
      %85 = vector.multi_reduction <maximumf>, %84, %cst_49 [1] : vector<8x8xf32> to vector<8xf32>
      %86 = vector.shape_cast %85 : vector<8xf32> to vector<8x1xf32>
      %87 = vector.broadcast %86 : vector<8x1xf32> to vector<8x8xf32>
      %88 = arith.subf %84, %87 : vector<8x8xf32>
      %89 = math.exp %88 : vector<8x8xf32>
      %cst_50 = arith.constant dense<0.000000e+00> : vector<8xf32>
      %90 = vector.multi_reduction <add>, %89, %cst_50 [1] : vector<8x8xf32> to vector<8xf32>
      %91 = vector.shape_cast %90 : vector<8xf32> to vector<8x1xf32>
      %92 = tpu.reciprocal %91 {approx = true} : vector<8x1xf32> -> vector<8x1xf32>
      %93 = arith.truncf %89 : vector<8x8xf32> to vector<8x8xbf16>
      %cst_51 = arith.constant dense<0.000000e+00> : vector<8x8xf32>
      %94 = tpu.matmul %93, %78, %cst_51 {dimension_numbers = #tpu.dot_dimension_numbers<[1], [0], [0], [1], [0, 0, 1, 1], [], []>} : vector<8x8xbf16>, vector<8x8xbf16>, vector<8x8xf32> -> vector<8x8xf32>
      %95 = vector.broadcast %92 : vector<8x1xf32> to vector<8x8xf32>
      %96 = arith.mulf %94, %95 : vector<8x8xf32>
      %97 = arith.truncf %96 : vector<8x8xf32> to vector<8x8xbf16>
      %c0_52 = arith.constant 0 : index
      %c8_53 = arith.constant 8 : index
      %98 = vector.load %arg18[%c0_52, %c8_53] : memref<8x32xbf16, #tpu.memory_space<vmem>>, vector<8x8xbf16>
      tpu.vector_store %arg18[%c0_52, %c8_53], %97 {strides = array<i32>} : memref<8x32xbf16, #tpu.memory_space<vmem>>, vector<8x8xbf16>,
      %c0_54 = arith.constant 0 : index
      %c16 = arith.constant 16 : index
      %99 = vector.load %arg17[%c0_54, %c16] : memref<8x96xbf16, #tpu.memory_space<vmem>>, vector<8x8xbf16>
      %c0_55 = arith.constant 0 : index
      %c48 = arith.constant 48 : index
      %100 = vector.load %arg17[%c0_55, %c48] : memref<8x96xbf16, #tpu.memory_space<vmem>>, vector<8x8xbf16>
      %c0_56 = arith.constant 0 : index
      %c80 = arith.constant 80 : index
      %101 = vector.load %arg17[%c0_56, %c80] : memref<8x96xbf16, #tpu.memory_space<vmem>>, vector<8x8xbf16>
      %cst_57 = arith.constant dense<0.000000e+00> : vector<8x8xf32>
      %102 = tpu.matmul %99, %100, %cst_57 {dimension_numbers = #tpu.dot_dimension_numbers<[1], [1], [0], [0], [0, 0, 1, 0], [], []>} : vector<8x8xbf16>, vector<8x8xbf16>, vector<8x8xf32> -> vector<8x8xf32>
      %103 = vector.broadcast %52 : vector<1x8xi32> to vector<8x8xi32>
      %104 = vector.broadcast %51 : vector<8x1xi32> to vector<8x8xi32>
      %105 = arith.cmpi sle, %103, %104 : vector<8x8xi32>
      %cst_58 = arith.constant -1.000000e+30 : f32
      %106 = vector.broadcast %cst_58 : f32 to vector<8x8xf32>
      %107 = arith.select %105, %102, %106 : vector<8x8xi1>, vector<8x8xf32>
      %cst_59 = arith.constant dense<0xFF800000> : vector<8xf32>
      %108 = vector.multi_reduction <maximumf>, %107, %cst_59 [1] : vector<8x8xf32> to vector<8xf32>
      %109 = vector.shape_cast %108 : vector<8xf32> to vector<8x1xf32>
      %110 = vector.broadcast %109 : vector<8x1xf32> to vector<8x8xf32>
      %111 = arith.subf %107, %110 : vector<8x8xf32>
      %112 = math.exp %111 : vector<8x8xf32>
      %cst_60 = arith.constant dense<0.000000e+00> : vector<8xf32>
      %113 = vector.multi_reduction <add>, %112, %cst_60 [1] : vector<8x8xf32> to vector<8xf32>
      %114 = vector.shape_cast %113 : vector<8xf32> to vector<8x1xf32>
      %115 = tpu.reciprocal %114 {approx = true} : vector<8x1xf32> -> vector<8x1xf32>
      %116 = arith.truncf %112 : vector<8x8xf32> to vector<8x8xbf16>
      %cst_61 = arith.constant dense<0.000000e+00> : vector<8x8xf32>
      %117 = tpu.matmul %116, %101, %cst_61 {dimension_numbers = #tpu.dot_dimension_numbers<[1], [0], [0], [1], [0, 0, 1, 1], [], []>} : vector<8x8xbf16>, vector<8x8xbf16>, vector<8x8xf32> -> vector<8x8xf32>
      %118 = vector.broadcast %115 : vector<8x1xf32> to vector<8x8xf32>
      %119 = arith.mulf %117, %118 : vector<8x8xf32>
      %120 = arith.truncf %119 : vector<8x8xf32> to vector<8x8xbf16>
      %c0_62 = arith.constant 0 : index
      %c16_63 = arith.constant 16 : index
      %121 = vector.load %arg18[%c0_62, %c16_63] : memref<8x32xbf16, #tpu.memory_space<vmem>>, vector<8x8xbf16>
      tpu.vector_store %arg18[%c0_62, %c16_63], %120 {strides = array<i32>} : memref<8x32xbf16, #tpu.memory_space<vmem>>, vector<8x8xbf16>,
      %c0_64 = arith.constant 0 : index
      %c24 = arith.constant 24 : index
      %122 = vector.load %arg17[%c0_64, %c24] : memref<8x96xbf16, #tpu.memory_space<vmem>>, vector<8x8xbf16>
      %c0_65 = arith.constant 0 : index
      %c56 = arith.constant 56 : index
      %123 = vector.load %arg17[%c0_65, %c56] : memref<8x96xbf16, #tpu.memory_space<vmem>>, vector<8x8xbf16>
      %c0_66 = arith.constant 0 : index
      %c88 = arith.constant 88 : index
      %124 = vector.load %arg17[%c0_66, %c88] : memref<8x96xbf16, #tpu.memory_space<vmem>>, vector<8x8xbf16>
      %cst_67 = arith.constant dense<0.000000e+00> : vector<8x8xf32>
      %125 = tpu.matmul %122, %123, %cst_67 {dimension_numbers = #tpu.dot_dimension_numbers<[1], [1], [0], [0], [0, 0, 1, 0], [], []>} : vector<8x8xbf16>, vector<8x8xbf16>, vector<8x8xf32> -> vector<8x8xf32>
      %126 = vector.broadcast %52 : vector<1x8xi32> to vector<8x8xi32>
      %127 = vector.broadcast %51 : vector<8x1xi32> to vector<8x8xi32>
      %128 = arith.cmpi sle, %126, %127 : vector<8x8xi32>
      %cst_68 = arith.constant -1.000000e+30 : f32
      %129 = vector.broadcast %cst_68 : f32 to vector<8x8xf32>
      %130 = arith.select %128, %125, %129 : vector<8x8xi1>, vector<8x8xf32>
      %cst_69 = arith.constant dense<0xFF800000> : vector<8xf32>
      %131 = vector.multi_reduction <maximumf>, %130, %cst_69 [1] : vector<8x8xf32> to vector<8xf32>
      %132 = vector.shape_cast %131 : vector<8xf32> to vector<8x1xf32>
      %133 = vector.broadcast %132 : vector<8x1xf32> to vector<8x8xf32>
      %134 = arith.subf %130, %133 : vector<8x8xf32>
      %135 = math.exp %134 : vector<8x8xf32>
      %cst_70 = arith.constant dense<0.000000e+00> : vector<8xf32>
      %136 = vector.multi_reduction <add>, %135, %cst_70 [1] : vector<8x8xf32> to vector<8xf32>
      %137 = vector.shape_cast %136 : vector<8xf32> to vector<8x1xf32>
      %138 = tpu.reciprocal %137 {approx = true} : vector<8x1xf32> -> vector<8x1xf32>
      %139 = arith.truncf %135 : vector<8x8xf32> to vector<8x8xbf16>
      %cst_71 = arith.constant dense<0.000000e+00> : vector<8x8xf32>
      %140 = tpu.matmul %139, %124, %cst_71 {dimension_numbers = #tpu.dot_dimension_numbers<[1], [0], [0], [1], [0, 0, 1, 1], [], []>} : vector<8x8xbf16>, vector<8x8xbf16>, vector<8x8xf32> -> vector<8x8xf32>
      %141 = vector.broadcast %138 : vector<8x1xf32> to vector<8x8xf32>
      %142 = arith.mulf %140, %141 : vector<8x8xf32>
      %143 = arith.truncf %142 : vector<8x8xf32> to vector<8x8xbf16>
      %c0_72 = arith.constant 0 : index
      %c24_73 = arith.constant 24 : index
      %144 = vector.load %arg18[%c0_72, %c24_73] : memref<8x32xbf16, #tpu.memory_space<vmem>>, vector<8x8xbf16>
      tpu.vector_store %arg18[%c0_72, %c24_73], %143 {strides = array<i32>} : memref<8x32xbf16, #tpu.memory_space<vmem>>, vector<8x8xbf16>,
      %c0_74 = arith.constant 0 : index
      %c0_75 = arith.constant 0 : index
      %145 = vector.load %arg18[%c0_74, %c0_75] : memref<8x32xbf16, #tpu.memory_space<vmem>>, vector<8x32xbf16>
      %c0_76 = arith.constant 0 : index
      %c0_77 = arith.constant 0 : index
      %146 = vector.load %arg4[%c0_76, %c0_77] : memref<32x32xbf16, #tpu.memory_space<vmem>>, vector<32x32xbf16>
      %cst_78 = arith.constant dense<0.000000e+00> : vector<8x32xf32>
      %147 = tpu.matmul %145, %146, %cst_78 {dimension_numbers = #tpu.dot_dimension_numbers<[1], [0], [0], [1], [0, 0, 1, 1], [], []>} : vector<8x32xbf16>, vector<32x32xbf16>, vector<8x32xf32> -> vector<8x32xf32>
      %148 = arith.addf %21, %147 : vector<8x32xf32>
      %c0_79 = arith.constant 0 : index
      %c0_80 = arith.constant 0 : index
      %149 = vector.load %arg5[%c0_79, %c0_80] : memref<1x32xf32, #tpu.memory_space<vmem>>, vector<1x32xf32>
      %150 = vector.broadcast %149 : vector<1x32xf32> to vector<8x32xf32>
      %151 = arith.addf %148, %150 : vector<8x32xf32>
      %c0_81 = arith.constant 0 : index
      %c0_82 = arith.constant 0 : index
      %152 = vector.load %arg19[%c0_81, %c0_82] : memref<8x32xf32, #tpu.memory_space<vmem>>, vector<8x32xf32>
      tpu.vector_store %arg19[%c0_81, %c0_82], %151 {strides = array<i32>} : memref<8x32xf32, #tpu.memory_space<vmem>>, vector<8x32xf32>,
      %c0_83 = arith.constant 0 : index
      %c0_84 = arith.constant 0 : index
      %153 = vector.load %arg12[%c0_83, %c0_84] : memref<1x32xf32, #tpu.memory_space<vmem>>, vector<1x32xf32>
      %c0_85 = arith.constant 0 : index
      %c0_86 = arith.constant 0 : index
      %154 = vector.load %arg13[%c0_85, %c0_86] : memref<1x32xf32, #tpu.memory_space<vmem>>, vector<1x32xf32>
      %cst_87 = arith.constant dense<0.000000e+00> : vector<8xf32>
      %155 = vector.multi_reduction <add>, %151, %cst_87 [1] : vector<8x32xf32> to vector<8xf32>
      %156 = vector.shape_cast %155 : vector<8xf32> to vector<8x1xf32>
      %cst_88 = arith.constant 3.200000e+01 : f32
      %157 = vector.broadcast %cst_88 : f32 to vector<8x1xf32>
      %158 = arith.divf %156, %157 : vector<8x1xf32>
      %159 = vector.broadcast %158 : vector<8x1xf32> to vector<8x32xf32>
      %160 = arith.subf %151, %159 : vector<8x32xf32>
      %161 = arith.mulf %160, %160 : vector<8x32xf32>
      %cst_89 = arith.constant dense<0.000000e+00> : vector<8xf32>
      %162 = vector.multi_reduction <add>, %161, %cst_89 [1] : vector<8x32xf32> to vector<8xf32>
      %163 = vector.shape_cast %162 : vector<8xf32> to vector<8x1xf32>
      %cst_90 = arith.constant 3.200000e+01 : f32
      %164 = vector.broadcast %cst_90 : f32 to vector<8x1xf32>
      %165 = arith.divf %163, %164 : vector<8x1xf32>
      %166 = vector.broadcast %158 : vector<8x1xf32> to vector<8x32xf32>
      %167 = arith.subf %151, %166 : vector<8x32xf32>
      %cst_91 = arith.constant 9.99999974E-6 : f32
      %168 = vector.broadcast %cst_91 : f32 to vector<8x1xf32>
      %169 = arith.addf %165, %168 : vector<8x1xf32>
      %170 = math.rsqrt %169 : vector<8x1xf32>
      %171 = vector.broadcast %170 : vector<8x1xf32> to vector<8x32xf32>
      %172 = arith.mulf %167, %171 : vector<8x32xf32>
      %173 = vector.broadcast %153 : vector<1x32xf32> to vector<8x32xf32>
      %174 = arith.mulf %172, %173 : vector<8x32xf32>
      %175 = vector.broadcast %154 : vector<1x32xf32> to vector<8x32xf32>
      %176 = arith.addf %174, %175 : vector<8x32xf32>
      %177 = arith.truncf %176 : vector<8x32xf32> to vector<8x32xbf16>
      %c0_92 = arith.constant 0 : index
      %c0_93 = arith.constant 0 : index
      %178 = vector.load %arg20[%c0_92, %c0_93] : memref<8x32xbf16, #tpu.memory_space<vmem>>, vector<8x32xbf16>
      tpu.vector_store %arg20[%c0_92, %c0_93], %177 {strides = array<i32>} : memref<8x32xbf16, #tpu.memory_space<vmem>>, vector<8x32xbf16>,
      %cst_94 = arith.constant 0.000000e+00 : f32
      %179 = vector.broadcast %cst_94 : f32 to vector<8x32xf32>
      %c0_95 = arith.constant 0 : index
      %c0_96 = arith.constant 0 : index
      %180 = vector.load %arg21[%c0_95, %c0_96] : memref<8x32xf32, #tpu.memory_space<vmem>>, vector<8x32xf32>
      tpu.vector_store %arg21[%c0_95, %c0_96], %179 {strides = array<i32>} : memref<8x32xf32, #tpu.memory_space<vmem>>, vector<8x32xf32>,
    } else {
    }
    %c0 = arith.constant 0 : index
    %c0_1 = arith.constant 0 : index
    %3 = vector.load %arg20[%c0, %c0_1] : memref<8x32xbf16, #tpu.memory_space<vmem>>, vector<8x32xbf16>
    %c0_2 = arith.constant 0 : index
    %c0_3 = arith.constant 0 : index
    %4 = vector.load %arg6[%c0_2, %c0_3] : memref<32x128xbf16, #tpu.memory_space<vmem>>, vector<32x128xbf16>
    %cst = arith.constant dense<0.000000e+00> : vector<8x128xf32>
    %5 = tpu.matmul %3, %4, %cst {dimension_numbers = #tpu.dot_dimension_numbers<[1], [0], [0], [1], [0, 0, 1, 1], [], []>} : vector<8x32xbf16>, vector<32x128xbf16>, vector<8x128xf32> -> vector<8x128xf32>
    %c0_4 = arith.constant 0 : index
    %c0_5 = arith.constant 0 : index
    %6 = vector.load %arg7[%c0_4, %c0_5] : memref<1x128xf32, #tpu.memory_space<vmem>>, vector<1x128xf32>
    %7 = vector.broadcast %6 : vector<1x128xf32> to vector<8x128xf32>
    %8 = arith.addf %5, %7 : vector<8x128xf32>
    %cst_6 = arith.constant 0.000000e+00 : f32
    %9 = vector.broadcast %cst_6 : f32 to vector<8x128xf32>
    %10 = arith.maximumf %8, %9 : vector<8x128xf32>
    %11 = arith.truncf %10 : vector<8x128xf32> to vector<8x128xbf16>
    %c0_7 = arith.constant 0 : index
    %c0_8 = arith.constant 0 : index
    %12 = vector.load %arg21[%c0_7, %c0_8] : memref<8x32xf32, #tpu.memory_space<vmem>>, vector<8x32xf32>
    %c0_9 = arith.constant 0 : index
    %c0_10 = arith.constant 0 : index
    %13 = vector.load %arg8[%c0_9, %c0_10] : memref<128x32xbf16, #tpu.memory_space<vmem>>, vector<128x32xbf16>
    %cst_11 = arith.constant dense<0.000000e+00> : vector<8x32xf32>
    %14 = tpu.matmul %11, %13, %cst_11 {dimension_numbers = #tpu.dot_dimension_numbers<[1], [0], [0], [1], [0, 0, 1, 1], [], []>} : vector<8x128xbf16>, vector<128x32xbf16>, vector<8x32xf32> -> vector<8x32xf32>
    %15 = arith.addf %12, %14 : vector<8x32xf32>
    %c0_12 = arith.constant 0 : index
    %c0_13 = arith.constant 0 : index
    %16 = vector.load %arg21[%c0_12, %c0_13] : memref<8x32xf32, #tpu.memory_space<vmem>>, vector<8x32xf32>
    tpu.vector_store %arg21[%c0_12, %c0_13], %15 {strides = array<i32>} : memref<8x32xf32, #tpu.memory_space<vmem>>, vector<8x32xf32>,
    %c0_i32_14 = arith.constant 0 : i32
    %17 = arith.cmpi eq, %arg1, %c0_i32_14 : i32
    %18 = arith.extui %17 : i1 to i32
    %c0_i32_15 = arith.constant 0 : i32
    %19 = arith.cmpi ne, %18, %c0_i32_15 : i32
    scf.if %19 {
      %c0_16 = arith.constant 0 : index
      %c0_17 = arith.constant 0 : index
      %20 = vector.load %arg19[%c0_16, %c0_17] : memref<8x32xf32, #tpu.memory_space<vmem>>, vector<8x32xf32>
      %c0_18 = arith.constant 0 : index
      %c0_19 = arith.constant 0 : index
      %21 = vector.load %arg21[%c0_18, %c0_19] : memref<8x32xf32, #tpu.memory_space<vmem>>, vector<8x32xf32>
      %22 = arith.addf %20, %21 : vector<8x32xf32>
      %c0_20 = arith.constant 0 : index
      %c0_21 = arith.constant 0 : index
      %23 = vector.load %arg9[%c0_20, %c0_21] : memref<1x32xf32, #tpu.memory_space<vmem>>, vector<1x32xf32>
      %24 = vector.broadcast %23 : vector<1x32xf32> to vector<8x32xf32>
      %25 = arith.addf %22, %24 : vector<8x32xf32>
      %c0_22 = arith.constant 0 : index
      %c0_23 = arith.constant 0 : index
      %26 = vector.load %arg14[%c0_22, %c0_23] : memref<1x32xf32, #tpu.memory_space<vmem>>, vector<1x32xf32>
      %c0_24 = arith.constant 0 : index
      %c0_25 = arith.constant 0 : index
      %27 = vector.load %arg15[%c0_24, %c0_25] : memref<1x32xf32, #tpu.memory_space<vmem>>, vector<1x32xf32>
      %cst_26 = arith.constant dense<0.000000e+00> : vector<8xf32>
      %28 = vector.multi_reduction <add>, %25, %cst_26 [1] : vector<8x32xf32> to vector<8xf32>
      %29 = vector.shape_cast %28 : vector<8xf32> to vector<8x1xf32>
      %cst_27 = arith.constant 3.200000e+01 : f32
      %30 = vector.broadcast %cst_27 : f32 to vector<8x1xf32>
      %31 = arith.divf %29, %30 : vector<8x1xf32>
      %32 = vector.broadcast %31 : vector<8x1xf32> to vector<8x32xf32>
      %33 = arith.subf %25, %32 : vector<8x32xf32>
      %34 = arith.mulf %33, %33 : vector<8x32xf32>
      %cst_28 = arith.constant dense<0.000000e+00> : vector<8xf32>
      %35 = vector.multi_reduction <add>, %34, %cst_28 [1] : vector<8x32xf32> to vector<8xf32>
      %36 = vector.shape_cast %35 : vector<8xf32> to vector<8x1xf32>
      %cst_29 = arith.constant 3.200000e+01 : f32
      %37 = vector.broadcast %cst_29 : f32 to vector<8x1xf32>
      %38 = arith.divf %36, %37 : vector<8x1xf32>
      %39 = vector.broadcast %31 : vector<8x1xf32> to vector<8x32xf32>
      %40 = arith.subf %25, %39 : vector<8x32xf32>
      %cst_30 = arith.constant 9.99999974E-6 : f32
      %41 = vector.broadcast %cst_30 : f32 to vector<8x1xf32>
      %42 = arith.addf %38, %41 : vector<8x1xf32>
      %43 = math.rsqrt %42 : vector<8x1xf32>
      %44 = vector.broadcast %43 : vector<8x1xf32> to vector<8x32xf32>
      %45 = arith.mulf %40, %44 : vector<8x32xf32>
      %46 = vector.broadcast %26 : vector<1x32xf32> to vector<8x32xf32>
      %47 = arith.mulf %45, %46 : vector<8x32xf32>
      %48 = vector.broadcast %27 : vector<1x32xf32> to vector<8x32xf32>
      %49 = arith.addf %47, %48 : vector<8x32xf32>
      %c0_31 = arith.constant 0 : index
      %c0_32 = arith.constant 0 : index
      %c0_33 = arith.constant 0 : index
      %50 = vector.load %arg16[%c0_31, %c0_32, %c0_33] : memref<1x8x32xf32, #tpu.memory_space<vmem>>, vector<1x8x32xf32>
      %51 = vector.shape_cast %50 : vector<1x8x32xf32> to vector<8x32xf32>
      %52 = vector.shape_cast %49 : vector<8x32xf32> to vector<1x8x32xf32>
      tpu.vector_store %arg16[%c0_31, %c0_32, %c0_33], %52 {strides = array<i32>} : memref<1x8x32xf32, #tpu.memory_space<vmem>>, vector<1x8x32xf32>,
    } else {
    }
    return
  }
  func.func @transform_0(%arg0: i32, %arg1: i32) -> (i32, i32, i32) {
    %c0_i32 = arith.constant 0 : i32
    %c0_i32_0 = arith.constant 0 : i32
    %c0_i32_1 = arith.constant 0 : i32
    return %arg0, %c0_i32, %c0_i32_0 : i32, i32, i32
  }
  func.func @transform_1(%arg0: i32, %arg1: i32) -> (i32, i32) {
    %c0_i32 = arith.constant 0 : i32
    %c0_i32_0 = arith.constant 0 : i32
    %c0_i32_1 = arith.constant 0 : i32
    return %c0_i32, %c0_i32_0 : i32, i32
  }
  func.func @transform_2(%arg0: i32, %arg1: i32) -> (i32, i32) {
    %c0_i32 = arith.constant 0 : i32
    %c0_i32_0 = arith.constant 0 : i32
    %c0_i32_1 = arith.constant 0 : i32
    return %c0_i32, %c0_i32_0 : i32, i32
  }
  func.func @transform_3(%arg0: i32, %arg1: i32) -> (i32, i32) {
    %c0_i32 = arith.constant 0 : i32
    %c0_i32_0 = arith.constant 0 : i32
    %c0_i32_1 = arith.constant 0 : i32
    return %c0_i32, %c0_i32_0 : i32, i32
  }
  func.func @transform_4(%arg0: i32, %arg1: i32) -> (i32, i32) {
    %c0_i32 = arith.constant 0 : i32
    %c0_i32_0 = arith.constant 0 : i32
    return %c0_i32, %arg1 : i32, i32
  }
  func.func @transform_5(%arg0: i32, %arg1: i32) -> (i32, i32) {
    %c0_i32 = arith.constant 0 : i32
    %c0_i32_0 = arith.constant 0 : i32
    return %c0_i32, %arg1 : i32, i32
  }
  func.func @transform_6(%arg0: i32, %arg1: i32) -> (i32, i32) {
    %c0_i32 = arith.constant 0 : i32
    %c0_i32_0 = arith.constant 0 : i32
    return %arg1, %c0_i32 : i32, i32
  }
  func.func @transform_7(%arg0: i32, %arg1: i32) -> (i32, i32) {
    %c0_i32 = arith.constant 0 : i32
    %c0_i32_0 = arith.constant 0 : i32
    %c0_i32_1 = arith.constant 0 : i32
    return %c0_i32, %c0_i32_0 : i32, i32
  }
  func.func @transform_8(%arg0: i32, %arg1: i32) -> (i32, i32) {
    %c0_i32 = arith.constant 0 : i32
    %c0_i32_0 = arith.constant 0 : i32
    %c0_i32_1 = arith.constant 0 : i32
    return %c0_i32, %c0_i32_0 : i32, i32
  }
  func.func @transform_9(%arg0: i32, %arg1: i32) -> (i32, i32) {
    %c0_i32 = arith.constant 0 : i32
    %c0_i32_0 = arith.constant 0 : i32
    %c0_i32_1 = arith.constant 0 : i32
    return %c0_i32, %c0_i32_0 : i32, i32
  }
  func.func @transform_10(%arg0: i32, %arg1: i32) -> (i32, i32) {
    %c0_i32 = arith.constant 0 : i32
    %c0_i32_0 = arith.constant 0 : i32
    %c0_i32_1 = arith.constant 0 : i32
    return %c0_i32, %c0_i32_0 : i32, i32
  }
  func.func @transform_11(%arg0: i32, %arg1: i32) -> (i32, i32) {
    %c0_i32 = arith.constant 0 : i32
    %c0_i32_0 = arith.constant 0 : i32
    %c0_i32_1 = arith.constant 0 : i32
    return %c0_i32, %c0_i32_0 : i32, i32
  }
  func.func @transform_12(%arg0: i32, %arg1: i32) -> (i32, i32) {
    %c0_i32 = arith.constant 0 : i32
    %c0_i32_0 = arith.constant 0 : i32
    %c0_i32_1 = arith.constant 0 : i32
    return %c0_i32, %c0_i32_0 : i32, i32
  }
  func.func @transform_13(%arg0: i32, %arg1: i32) -> (i32, i32) {
    %c0_i32 = arith.constant 0 : i32
    %c0_i32_0 = arith.constant 0 : i32
    %c0_i32_1 = arith.constant 0 : i32
    return %c0_i32, %c0_i32_0 : i32, i32
  }
  func.func @transform_14(%arg0: i32, %arg1: i32) -> (i32, i32, i32) {
    %c0_i32 = arith.constant 0 : i32
    %c0_i32_0 = arith.constant 0 : i32
    %c0_i32_1 = arith.constant 0 : i32
    return %arg0, %c0_i32, %c0_i32_0 : i32, i32, i32
  }
}

</mosaic_0001>

<llo_original>
// kernel: tpu_custom_call.1
$region0: #{tpu_custom_call.1}
  #allocation0 [shape = 'u32[]', space=smem, size = 0x4, offset = 0x4, fixed_abs, tag = 'smem constant byte address 0x4 - core index']
  #allocation1 [shape = 'u32[144,128]{1,0:T(1,128)}', space=vmem, size = 0x12000, scoped, tag = 'internal scratch']
  #allocation2 [shape = 'bf16[8,96]{1,0:T(8,128)(2,1)}', space=vmem, size = 0x800, scoped, tag = 'scratch operand']
  #allocation3 [shape = 'bf16[8,32]{1,0:T(8,128)(2,1)}', space=vmem, size = 0x800, scoped, tag = 'scratch operand']
  #allocation4 [shape = 'f32[8,32]{1,0:T(8,128)}', space=vmem, size = 0x1000, scoped, tag = 'scratch operand']
  #allocation5 [shape = 'bf16[8,32]{1,0:T(8,128)(2,1)}', space=vmem, size = 0x800, scoped, tag = 'scratch operand']
  #allocation6 [shape = 'f32[8,32]{1,0:T(8,128)}', space=vmem, size = 0x1000, scoped, tag = 'scratch operand']
  %s0 = inlined_call_operand.vmem [shape: f32[2,8,32], index: 0, kind: input, shape index: {}]
  %s1 = inlined_call_operand.vmem [shape: bf16[32,96], index: 1, kind: input, shape index: {}]
  %s2 = inlined_call_operand.vmem [shape: bf16[32,32], index: 2, kind: input, shape index: {}]
  %s3 = inlined_call_operand.vmem [shape: f32[1,32], index: 3, kind: input, shape index: {}]
  %s4 = inlined_call_operand.vmem [shape: bf16[32,128], index: 4, kind: input, shape index: {}]
  %s5 = inlined_call_operand.vmem [shape: f32[1,128], index: 5, kind: input, shape index: {}]
  %s6 = inlined_call_operand.vmem [shape: bf16[128,32], index: 6, kind: input, shape index: {}]
  %s7 = inlined_call_operand.vmem [shape: f32[1,32], index: 7, kind: input, shape index: {}]
  %s8 = inlined_call_operand.vmem [shape: f32[1,32], index: 8, kind: input, shape index: {}]
  %s9 = inlined_call_operand.vmem [shape: f32[1,32], index: 9, kind: input, shape index: {}]
  %s10 = inlined_call_operand.vmem [shape: f32[1,32], index: 10, kind: input, shape index: {}]
  %s11 = inlined_call_operand.vmem [shape: f32[1,32], index: 11, kind: input, shape index: {}]
  %s12 = inlined_call_operand.vmem [shape: f32[1,32], index: 12, kind: input, shape index: {}]
  %s13 = inlined_call_operand.vmem [shape: f32[1,32], index: 13, kind: input, shape index: {}]
  %s14 = inlined_call_operand.hbm [shape: f32[2,8,32], index: 14, kind: output, shape index: {}]
  %s15 = sld [smem:[#allocation0]]
  $region97: #{tpu_custom_call.1} parent=0
    _
  %s17 = ssub.s32 1, %s15
  %s18 = scalar_select 0, %s17, %s15
  $region1: #{tpu_custom_call.1} parent=0
    #allocation7 [shape = 'u8[8192]{0}', space=vmem, size = 0x2000, scoped, tag = 'output window, operand 0']
    #allocation8 [shape = 's32[2]{0}', space=sflag, size = 0x8, scoped, tag = 'scoped memory for tpu_custom_call.1']
    %19 = vsyncpa [#allocation8], 0
    %s20 = scalar_lea.sflag [#allocation8], 1
    %21 = vsyncpa %s20, 0
    loop: start=0, step=1, limit=4
    $region2: #{tpu_custom_call.1} parent=1 // loop_pre_header
      _
    $region3: #{tpu_custom_call.1} parent=1 // loop_header
      %s23 = sphi 0, %s27
      %p24 = scmp.ge.s32.totalorder %s23, 4
      %s30 = sphi 0, %s42
      %s31 = sphi 0, %s38
      %s32 = sphi 0, %s30
      %s33 = sphi 0, %s31
      %s34 = sphi 0, %s32
      %s35 = sphi 0, %s33
      %s45 = sphi 0, %s47
      %s48 = sphi 0, %s45
      %s49 = sphi 0, %s48
      %s65 = sphi 0, %s49
      %s69 = sphi 0, %s69
      %s71 = sphi 0, %s69
      %s72 = sphi 0, %s71
      %s86 = sphi 0, %s72
      %s90 = sphi 0, %s90
      %s92 = sphi 0, %s90
      %s93 = sphi 0, %s92
      %s107 = sphi 0, %s93
      %s111 = sphi 0, %s111
      %s113 = sphi 0, %s111
      %s114 = sphi 0, %s113
      %s128 = sphi 0, %s114
      %s134 = sphi 0, %s136
      %s137 = sphi 0, %s134
      %s138 = sphi 0, %s137
      %s154 = sphi 0, %s138
      %s160 = sphi 0, %s162
      %s163 = sphi 0, %s160
      %s164 = sphi 0, %s163
      %s180 = sphi 0, %s164
      %s186 = sphi 0, %s188
      %s189 = sphi 0, %s186
      %s190 = sphi 0, %s189
      %s206 = sphi 0, %s190
      %s210 = sphi 0, %s210
      %s212 = sphi 0, %s210
      %s213 = sphi 0, %s212
      %s227 = sphi 0, %s213
      %s231 = sphi 0, %s231
      %s233 = sphi 0, %s231
      %s234 = sphi 0, %s233
      %s248 = sphi 0, %s234
      %s252 = sphi 0, %s252
      %s254 = sphi 0, %s252
      %s255 = sphi 0, %s254
      %s269 = sphi 0, %s255
      %s273 = sphi 0, %s273
      %s275 = sphi 0, %s273
      %s276 = sphi 0, %s275
      %s290 = sphi 0, %s276
      %s294 = sphi 0, %s294
      %s296 = sphi 0, %s294
      %s297 = sphi 0, %s296
      %s311 = sphi 0, %s297
      %s315 = sphi 0, %s315
      %s317 = sphi 0, %s315
      %s318 = sphi 0, %s317
      %s332 = sphi 0, %s318
      %s336 = sphi 0, %s336
      %s338 = sphi 0, %s336
      %s339 = sphi 0, %s338
      %s353 = sphi 0, %s339
      %s359 = sphi 0, %s361
      %s362 = sphi 0, %s359
      %s363 = sphi 0, %s362
      %s379 = sphi 0, %s363
    $region4: #{tpu_custom_call.1} parent=1 // loop_header_branch
      %26 = sbr.rel (%p24) target = $region8
    $region5: #{tpu_custom_call.1} parent=1 // loop_body
      %s28 = ssub.s32 %s23, 1
      %s29 = ssub.s32 %s23, 2
      %s36 = sadd.s32 1, %s31
      %p37 = scmp.ge.s32.totalorder %s36, 1
      %s38 = scalar_select %p37, 0, %s36
      %s39 = sadd.s32 1, %s30
      %s40 = scalar_select %p37, %s39, %s30
      %p41 = scmp.ge.s32.totalorder %s40, 2
      %s42 = scalar_select %p41, 0, %s40
      %s43 = ssub.s32 %s30, %s42
      %p44 = scmp.eq.s32.totalorder %s43, 0
      %s46 = sadd.s32 %s45, 1
      %s47 = scalar_select %p44, %s45, %s46
      %p50 = pneg %p44
      %p51 = scmp.eq.s32.totalorder %s23, 1
      %p52 = por %p50, %p51
      %p53 = scmp.ne.s32.totalorder %s45, %s48
      %p54 = scmp.eq.s32.totalorder %s23, 0
      %p55 = por %p53, %p54
      %p56 = scmp.ne.s32.totalorder %s45, %s48
      %p57 = scmp.eq.s32.totalorder %s28, 1
      %p58 = por %p56, %p57
      %p59 = scmp.ne.s32.totalorder %s48, %s49
      %p60 = scmp.eq.s32.totalorder %s28, 0
      %p61 = por %p59, %p60
      %p62 = scmp.ne.s32.totalorder %s48, %s49
      %p63 = scmp.eq.s32.totalorder %s29, 1
      %p64 = por %p62, %p63
      %p66 = scmp.ne.s32.totalorder %s49, %s65
      %p67 = scmp.eq.s32.totalorder %s29, 0
      %p68 = por %p66, %p67
      %s70 = sadd.s32 %s69, 1
      %p73 = scmp.eq.s32.totalorder %s23, 1
      %p74 = scmp.ne.s32.totalorder %s69, %s71
      %p75 = scmp.eq.s32.totalorder %s23, 0
      %p76 = por %p74, %p75
      %p77 = scmp.ne.s32.totalorder %s69, %s71
      %p78 = scmp.eq.s32.totalorder %s28, 1
      %p79 = por %p77, %p78
      %p80 = scmp.ne.s32.totalorder %s71, %s72
      %p81 = scmp.eq.s32.totalorder %s28, 0
      %p82 = por %p80, %p81
      %p83 = scmp.ne.s32.totalorder %s71, %s72
      %p84 = scmp.eq.s32.totalorder %s29, 1
      %p85 = por %p83, %p84
      %p87 = scmp.ne.s32.totalorder %s72, %s86
      %p88 = scmp.eq.s32.totalorder %s29, 0
      %p89 = por %p87, %p88
      %s91 = sadd.s32 %s90, 1
      %p94 = scmp.eq.s32.totalorder %s23, 1
      %p95 = scmp.ne.s32.totalorder %s90, %s92
      %p96 = scmp.eq.s32.totalorder %s23, 0
      %p97 = por %p95, %p96
      %p98 = scmp.ne.s32.totalorder %s90, %s92
      %p99 = scmp.eq.s32.totalorder %s28, 1
      %p100 = por %p98, %p99
      %p101 = scmp.ne.s32.totalorder %s92, %s93
      %p102 = scmp.eq.s32.totalorder %s28, 0
      %p103 = por %p101, %p102
      %p104 = scmp.ne.s32.totalorder %s92, %s93
      %p105 = scmp.eq.s32.totalorder %s29, 1
      %p106 = por %p104, %p105
      %p108 = scmp.ne.s32.totalorder %s93, %s107
      %p109 = scmp.eq.s32.totalorder %s29, 0
      %p110 = por %p108, %p109
      %s112 = sadd.s32 %s111, 1
      %p115 = scmp.eq.s32.totalorder %s23, 1
      %p116 = scmp.ne.s32.totalorder %s111, %s113
      %p117 = scmp.eq.s32.totalorder %s23, 0
      %p118 = por %p116, %p117
      %p119 = scmp.ne.s32.totalorder %s111, %s113
      %p120 = scmp.eq.s32.totalorder %s28, 1
      %p121 = por %p119, %p120
      %p122 = scmp.ne.s32.totalorder %s113, %s114
      %p123 = scmp.eq.s32.totalorder %s28, 0
      %p124 = por %p122, %p123
      %p125 = scmp.ne.s32.totalorder %s113, %s114
      %p126 = scmp.eq.s32.totalorder %s29, 1
      %p127 = por %p125, %p126
      %p129 = scmp.ne.s32.totalorder %s114, %s128
      %p130 = scmp.eq.s32.totalorder %s29, 0
      %p131 = por %p129, %p130
      %s132 = ssub.s32 %s31, %s38
      %p133 = scmp.eq.s32.totalorder %s132, 0
      %s135 = sadd.s32 %s134, 1
      %s136 = scalar_select %p133, %s134, %s135
      %p139 = pneg %p133
      %p140 = scmp.eq.s32.totalorder %s23, 1
      %p141 = por %p139, %p140
      %p142 = scmp.ne.s32.totalorder %s134, %s137
      %p143 = scmp.eq.s32.totalorder %s23, 0
      %p144 = por %p142, %p143
      %p145 = scmp.ne.s32.totalorder %s134, %s137
      %p146 = scmp.eq.s32.totalorder %s28, 1
      %p147 = por %p145, %p146
      %p148 = scmp.ne.s32.totalorder %s137, %s138
      %p149 = scmp.eq.s32.totalorder %s28, 0
      %p150 = por %p148, %p149
      %p151 = scmp.ne.s32.totalorder %s137, %s138
      %p152 = scmp.eq.s32.totalorder %s29, 1
      %p153 = por %p151, %p152
      %p155 = scmp.ne.s32.totalorder %s138, %s154
      %p156 = scmp.eq.s32.totalorder %s29, 0
      %p157 = por %p155, %p156
      %s158 = ssub.s32 %s31, %s38
      %p159 = scmp.eq.s32.totalorder %s158, 0
      %s161 = sadd.s32 %s160, 1
      %s162 = scalar_select %p159, %s160, %s161
      %p165 = pneg %p159
      %p166 = scmp.eq.s32.totalorder %s23, 1
      %p167 = por %p165, %p166
      %p168 = scmp.ne.s32.totalorder %s160, %s163
      %p169 = scmp.eq.s32.totalorder %s23, 0
      %p170 = por %p168, %p169
      %p171 = scmp.ne.s32.totalorder %s160, %s163
      %p172 = scmp.eq.s32.totalorder %s28, 1
      %p173 = por %p171, %p172
      %p174 = scmp.ne.s32.totalorder %s163, %s164
      %p175 = scmp.eq.s32.totalorder %s28, 0
      %p176 = por %p174, %p175
      %p177 = scmp.ne.s32.totalorder %s163, %s164
      %p178 = scmp.eq.s32.totalorder %s29, 1
      %p179 = por %p177, %p178
      %p181 = scmp.ne.s32.totalorder %s164, %s180
      %p182 = scmp.eq.s32.totalorder %s29, 0
      %p183 = por %p181, %p182
      %s184 = ssub.s32 %s31, %s38
      %p185 = scmp.eq.s32.totalorder %s184, 0
      %s187 = sadd.s32 %s186, 1
      %s188 = scalar_select %p185, %s186, %s187
      %p191 = pneg %p185
      %p192 = scmp.eq.s32.totalorder %s23, 1
      %p193 = por %p191, %p192
      %p194 = scmp.ne.s32.totalorder %s186, %s189
      %p195 = scmp.eq.s32.totalorder %s23, 0
      %p196 = por %p194, %p195
      %p197 = scmp.ne.s32.totalorder %s186, %s189
      %p198 = scmp.eq.s32.totalorder %s28, 1
      %p199 = por %p197, %p198
      %p200 = scmp.ne.s32.totalorder %s189, %s190
      %p201 = scmp.eq.s32.totalorder %s28, 0
      %p202 = por %p200, %p201
      %p203 = scmp.ne.s32.totalorder %s189, %s190
      %p204 = scmp.eq.s32.totalorder %s29, 1
      %p205 = por %p203, %p204
      %p207 = scmp.ne.s32.totalorder %s190, %s206
      %p208 = scmp.eq.s32.totalorder %s29, 0
      %p209 = por %p207, %p208
      %s211 = sadd.s32 %s210, 1
      %p214 = scmp.eq.s32.totalorder %s23, 1
      %p215 = scmp.ne.s32.totalorder %s210, %s212
      %p216 = scmp.eq.s32.totalorder %s23, 0
      %p217 = por %p215, %p216
      %p218 = scmp.ne.s32.totalorder %s210, %s212
      %p219 = scmp.eq.s32.totalorder %s28, 1
      %p220 = por %p218, %p219
      %p221 = scmp.ne.s32.totalorder %s212, %s213
      %p222 = scmp.eq.s32.totalorder %s28, 0
      %p223 = por %p221, %p222
      %p224 = scmp.ne.s32.totalorder %s212, %s213
      %p225 = scmp.eq.s32.totalorder %s29, 1
      %p226 = por %p224, %p225
      %p228 = scmp.ne.s32.totalorder %s213, %s227
      %p229 = scmp.eq.s32.totalorder %s29, 0
      %p230 = por %p228, %p229
      %s232 = sadd.s32 %s231, 1
      %p235 = scmp.eq.s32.totalorder %s23, 1
      %p236 = scmp.ne.s32.totalorder %s231, %s233
      %p237 = scmp.eq.s32.totalorder %s23, 0
      %p238 = por %p236, %p237
      %p239 = scmp.ne.s32.totalorder %s231, %s233
      %p240 = scmp.eq.s32.totalorder %s28, 1
      %p241 = por %p239, %p240
      %p242 = scmp.ne.s32.totalorder %s233, %s234
      %p243 = scmp.eq.s32.totalorder %s28, 0
      %p244 = por %p242, %p243
      %p245 = scmp.ne.s32.totalorder %s233, %s234
      %p246 = scmp.eq.s32.totalorder %s29, 1
      %p247 = por %p245, %p246
      %p249 = scmp.ne.s32.totalorder %s234, %s248
      %p250 = scmp.eq.s32.totalorder %s29, 0
      %p251 = por %p249, %p250
      %s253 = sadd.s32 %s252, 1
      %p256 = scmp.eq.s32.totalorder %s23, 1
      %p257 = scmp.ne.s32.totalorder %s252, %s254
      %p258 = scmp.eq.s32.totalorder %s23, 0
      %p259 = por %p257, %p258
      %p260 = scmp.ne.s32.totalorder %s252, %s254
      %p261 = scmp.eq.s32.totalorder %s28, 1
      %p262 = por %p260, %p261
      %p263 = scmp.ne.s32.totalorder %s254, %s255
      %p264 = scmp.eq.s32.totalorder %s28, 0
      %p265 = por %p263, %p264
      %p266 = scmp.ne.s32.totalorder %s254, %s255
      %p267 = scmp.eq.s32.totalorder %s29, 1
      %p268 = por %p266, %p267
      %p270 = scmp.ne.s32.totalorder %s255, %s269
      %p271 = scmp.eq.s32.totalorder %s29, 0
      %p272 = por %p270, %p271
      %s274 = sadd.s32 %s273, 1
      %p277 = scmp.eq.s32.totalorder %s23, 1
      %p278 = scmp.ne.s32.totalorder %s273, %s275
      %p279 = scmp.eq.s32.totalorder %s23, 0
      %p280 = por %p278, %p279
      %p281 = scmp.ne.s32.totalorder %s273, %s275
      %p282 = scmp.eq.s32.totalorder %s28, 1
      %p283 = por %p281, %p282
      %p284 = scmp.ne.s32.totalorder %s275, %s276
      %p285 = scmp.eq.s32.totalorder %s28, 0
      %p286 = por %p284, %p285
      %p287 = scmp.ne.s32.totalorder %s275, %s276
      %p288 = scmp.eq.s32.totalorder %s29, 1
      %p289 = por %p287, %p288
      %p291 = scmp.ne.s32.totalorder %s276, %s290
      %p292 = scmp.eq.s32.totalorder %s29, 0
      %p293 = por %p291, %p292
      %s295 = sadd.s32 %s294, 1
      %p298 = scmp.eq.s32.totalorder %s23, 1
      %p299 = scmp.ne.s32.totalorder %s294, %s296
      %p300 = scmp.eq.s32.totalorder %s23, 0
      %p301 = por %p299, %p300
      %p302 = scmp.ne.s32.totalorder %s294, %s296
      %p303 = scmp.eq.s32.totalorder %s28, 1
      %p304 = por %p302, %p303
      %p305 = scmp.ne.s32.totalorder %s296, %s297
      %p306 = scmp.eq.s32.totalorder %s28, 0
      %p307 = por %p305, %p306
      %p308 = scmp.ne.s32.totalorder %s296, %s297
      %p309 = scmp.eq.s32.totalorder %s29, 1
      %p310 = por %p308, %p309
      %p312 = scmp.ne.s32.totalorder %s297, %s311
      %p313 = scmp.eq.s32.totalorder %s29, 0
      %p314 = por %p312, %p313
      %s316 = sadd.s32 %s315, 1
      %p319 = scmp.eq.s32.totalorder %s23, 1
      %p320 = scmp.ne.s32.totalorder %s315, %s317
      %p321 = scmp.eq.s32.totalorder %s23, 0
      %p322 = por %p320, %p321
      %p323 = scmp.ne.s32.totalorder %s315, %s317
      %p324 = scmp.eq.s32.totalorder %s28, 1
      %p325 = por %p323, %p324
      %p326 = scmp.ne.s32.totalorder %s317, %s318
      %p327 = scmp.eq.s32.totalorder %s28, 0
      %p328 = por %p326, %p327
      %p329 = scmp.ne.s32.totalorder %s317, %s318
      %p330 = scmp.eq.s32.totalorder %s29, 1
      %p331 = por %p329, %p330
      %p333 = scmp.ne.s32.totalorder %s318, %s332
      %p334 = scmp.eq.s32.totalorder %s29, 0
      %p335 = por %p333, %p334
      %s337 = sadd.s32 %s336, 1
      %p340 = scmp.eq.s32.totalorder %s23, 1
      %p341 = scmp.ne.s32.totalorder %s336, %s338
      %p342 = scmp.eq.s32.totalorder %s23, 0
      %p343 = por %p341, %p342
      %p344 = scmp.ne.s32.totalorder %s336, %s338
      %p345 = scmp.eq.s32.totalorder %s28, 1
      %p346 = por %p344, %p345
      %p347 = scmp.ne.s32.totalorder %s338, %s339
      %p348 = scmp.eq.s32.totalorder %s28, 0
      %p349 = por %p347, %p348
      %p350 = scmp.ne.s32.totalorder %s338, %s339
      %p351 = scmp.eq.s32.totalorder %s29, 1
      %p352 = por %p350, %p351
      %p354 = scmp.ne.s32.totalorder %s339, %s353
      %p355 = scmp.eq.s32.totalorder %s29, 0
      %p356 = por %p354, %p355
      %s357 = ssub.s32 %s30, %s42
      %p358 = scmp.eq.s32.totalorder %s357, 0
      %s360 = sadd.s32 %s359, 1
      %s361 = scalar_select %p358, %s359, %s360
      %p364 = pneg %p358
      %p365 = scmp.eq.s32.totalorder %s23, 1
      %p366 = por %p364, %p365
      %p367 = scmp.ne.s32.totalorder %s359, %s362
      %p368 = scmp.eq.s32.totalorder %s23, 0
      %p369 = por %p367, %p368
      %p370 = scmp.ne.s32.totalorder %s359, %s362
      %p371 = scmp.eq.s32.totalorder %s28, 1
      %p372 = por %p370, %p371
      %p373 = scmp.ne.s32.totalorder %s362, %s363
      %p374 = scmp.eq.s32.totalorder %s28, 0
      %p375 = por %p373, %p374
      %p376 = scmp.ne.s32.totalorder %s362, %s363
      %p377 = scmp.eq.s32.totalorder %s29, 1
      %p378 = por %p376, %p377
      %p380 = scmp.ne.s32.totalorder %s363, %s379
      %p381 = scmp.eq.s32.totalorder %s29, 0
      %p382 = por %p380, %p381
      %p383 = scmp.le.s32.totalorder 1, %s23
      %p384 = scmp.lt.s32.totalorder %s23, 3
      %p385 = pnand %p383, %p384
      %p386 = pneg %p385
      // Predicated region
      $region9: #{tpu_custom_call.1} parent=5 // pred_check
        _
      $region10: #{tpu_custom_call.1} parent=5 // pred_check_branch
        %388 = sbr.rel (%p385) target = $region12
      $region11: #{tpu_custom_call.1} parent=5 // pred_region
        %s389 = ssub.s32 %s23, 1
        // Predicated region
        $region13: #{tpu_custom_call.1} parent=11 // pred_check
          %p390 = pneg %p82
        $region14: #{tpu_custom_call.1} parent=11 // pred_check_branch
          %392 = sbr.rel (%p390) target = $region16
        $region15: #{tpu_custom_call.1} parent=11 // pred_region
          _
        $region16: #{tpu_custom_call.1} parent=11 // pred_fallthru
          _
        // Predicated region
        $region17: #{tpu_custom_call.1} parent=11 // pred_check
          %p393 = pneg %p103
        $region18: #{tpu_custom_call.1} parent=11 // pred_check_branch
          %395 = sbr.rel (%p393) target = $region20
        $region19: #{tpu_custom_call.1} parent=11 // pred_region
          _
        $region20: #{tpu_custom_call.1} parent=11 // pred_fallthru
          _
        // Predicated region
        $region21: #{tpu_custom_call.1} parent=11 // pred_check
          %p396 = pneg %p124
        $region22: #{tpu_custom_call.1} parent=11 // pred_check_branch
          %398 = sbr.rel (%p396) target = $region24
        $region23: #{tpu_custom_call.1} parent=11 // pred_region
          _
        $region24: #{tpu_custom_call.1} parent=11 // pred_fallthru
          _
        // Predicated region
        $region25: #{tpu_custom_call.1} parent=11 // pred_check
          %p399 = pneg %p150
        $region26: #{tpu_custom_call.1} parent=11 // pred_check_branch
          %401 = sbr.rel (%p399) target = $region28
        $region27: #{tpu_custom_call.1} parent=11 // pred_region
          %p402 = scmp.lt.s32.totalorder %s33, 0
          %s403 = scalar_select %p402, %s33, 0
          %s404 = smul.addr %s403, 4
          %s405 = scalar_lea.vmem %s4, %s404
        $region28: #{tpu_custom_call.1} parent=11 // pred_fallthru
          _
        // Predicated region
        $region29: #{tpu_custom_call.1} parent=11 // pred_check
          %p406 = pneg %p176
        $region30: #{tpu_custom_call.1} parent=11 // pred_check_branch
          %408 = sbr.rel (%p406) target = $region32
        $region31: #{tpu_custom_call.1} parent=11 // pred_region
          %p409 = scmp.lt.s32.totalorder %s33, 0
          %s410 = scalar_select %p409, %s33, 0
          %s411 = scalar_lea.vmem %s5, %s410
        $region32: #{tpu_custom_call.1} parent=11 // pred_fallthru
          _
        // Predicated region
        $region33: #{tpu_custom_call.1} parent=11 // pred_check
          %p412 = pneg %p202
        $region34: #{tpu_custom_call.1} parent=11 // pred_check_branch
          %414 = sbr.rel (%p412) target = $region36
        $region35: #{tpu_custom_call.1} parent=11 // pred_region
          %s415 = smul.u32 16, %s33
          %p416 = scmp.lt.s32.totalorder %s415, 15
          %s417 = scalar_select %p416, %s415, 15
          %s418 = smul.addr %s417, 4
          %s419 = scalar_lea.vmem %s6, %s418
          %s420 = smul.u32 16, %s33
        $region36: #{tpu_custom_call.1} parent=11 // pred_fallthru
          _
        // Predicated region
        $region37: #{tpu_custom_call.1} parent=11 // pred_check
          %p421 = pneg %p223
        $region38: #{tpu_custom_call.1} parent=11 // pred_check_branch
          %423 = sbr.rel (%p421) target = $region40
        $region39: #{tpu_custom_call.1} parent=11 // pred_region
          _
        $region40: #{tpu_custom_call.1} parent=11 // pred_fallthru
          _
        // Predicated region
        $region41: #{tpu_custom_call.1} parent=11 // pred_check
          %p424 = pneg %p244
        $region42: #{tpu_custom_call.1} parent=11 // pred_check_branch
          %426 = sbr.rel (%p424) target = $region44
        $region43: #{tpu_custom_call.1} parent=11 // pred_region
          _
        $region44: #{tpu_custom_call.1} parent=11 // pred_fallthru
          _
        // Predicated region
        $region45: #{tpu_custom_call.1} parent=11 // pred_check
          %p427 = pneg %p265
        $region46: #{tpu_custom_call.1} parent=11 // pred_check_branch
          %429 = sbr.rel (%p427) target = $region48
        $region47: #{tpu_custom_call.1} parent=11 // pred_region
          _
        $region48: #{tpu_custom_call.1} parent=11 // pred_fallthru
          _
        // Predicated region
        $region49: #{tpu_custom_call.1} parent=11 // pred_check
          %p430 = pneg %p286
        $region50: #{tpu_custom_call.1} parent=11 // pred_check_branch
          %432 = sbr.rel (%p430) target = $region52
        $region51: #{tpu_custom_call.1} parent=11 // pred_region
          _
        $region52: #{tpu_custom_call.1} parent=11 // pred_fallthru
          _
        // Predicated region
        $region53: #{tpu_custom_call.1} parent=11 // pred_check
          %p433 = pneg %p307
        $region54: #{tpu_custom_call.1} parent=11 // pred_check_branch
          %435 = sbr.rel (%p433) target = $region56
        $region55: #{tpu_custom_call.1} parent=11 // pred_region
          _
        $region56: #{tpu_custom_call.1} parent=11 // pred_fallthru
          _
        // Predicated region
        $region57: #{tpu_custom_call.1} parent=11 // pred_check
          %p436 = pneg %p328
        $region58: #{tpu_custom_call.1} parent=11 // pred_check_branch
          %438 = sbr.rel (%p436) target = $region60
        $region59: #{tpu_custom_call.1} parent=11 // pred_region
          _
        $region60: #{tpu_custom_call.1} parent=11 // pred_fallthru
          _
        // Predicated region
        $region61: #{tpu_custom_call.1} parent=11 // pred_check
          %p439 = pneg %p349
        $region62: #{tpu_custom_call.1} parent=11 // pred_check_branch
          %441 = sbr.rel (%p439) target = $region64
        $region63: #{tpu_custom_call.1} parent=11 // pred_region
          _
        $region64: #{tpu_custom_call.1} parent=11 // pred_fallthru
          _
      $region12: #{tpu_custom_call.1} parent=5 // pred_fallthru
        _
      %p442 = scmp.lt.s32.totalorder %s23, 2
      // Predicated region
      $region65: #{tpu_custom_call.1} parent=5 // pred_check
        %p443 = pneg %p442
      $region66: #{tpu_custom_call.1} parent=5 // pred_check_branch
        %445 = sbr.rel (%p443) target = $region68
      $region67: #{tpu_custom_call.1} parent=5 // pred_region
        // Predicated region
        $region69: #{tpu_custom_call.1} parent=67 // pred_check
          %p446 = pneg %p55
        $region70: #{tpu_custom_call.1} parent=67 // pred_check_branch
          %448 = sbr.rel (%p446) target = $region72
        $region71: #{tpu_custom_call.1} parent=67 // pred_region
          %p449 = scmp.lt.s32.totalorder %s30, 1
          %s450 = scalar_select %p449, %s30, 1
          %s451 = smul.addr %s450, 8
          %s452 = scalar_lea.vmem %s0, %s451
        $region72: #{tpu_custom_call.1} parent=67 // pred_fallthru
          _
      $region68: #{tpu_custom_call.1} parent=5 // pred_fallthru
        _
      %p453 = scmp.le.s32.totalorder 1, %s23
      %p454 = scmp.lt.s32.totalorder %s23, 3
      %p455 = pnand %p453, %p454
      %p456 = pneg %p455
      // Predicated region
      $region73: #{tpu_custom_call.1} parent=5 // pred_check
        _
      $region74: #{tpu_custom_call.1} parent=5 // pred_check_branch
        %458 = sbr.rel (%p455) target = $region76
      $region75: #{tpu_custom_call.1} parent=5 // pred_region
        %s459 = ssub.s32 %s23, 1
        %p460 = scmp.lt.s32.totalorder %s32, 1
        %s461 = scalar_select %p460, %s32, 1
        %s462 = smul.addr %s461, 8
        %s463 = scalar_lea.vmem %s0, %s462
        %p464 = pneg %p61
        %p465 = pneg %p58
        %p466 = pneg %p82
        %p467 = pneg %p79
        %p468 = pneg %p103
        %p469 = pneg %p100
        %p470 = pneg %p124
        %p471 = pneg %p121
        %p472 = scmp.lt.s32.totalorder %s33, 0
        %s473 = scalar_select %p472, %s33, 0
        %s474 = smul.addr %s473, 4
        %s475 = scalar_lea.vmem %s4, %s474
        %p476 = pneg %p150
        %p477 = pneg %p147
        %p478 = scmp.lt.s32.totalorder %s33, 0
        %s479 = scalar_select %p478, %s33, 0
        %s480 = scalar_lea.vmem %s5, %s479
        %p481 = pneg %p176
        %p482 = pneg %p173
        %s483 = smul.u32 16, %s33
        %p484 = scmp.lt.s32.totalorder %s483, 15
        %s485 = scalar_select %p484, %s483, 15
        %s486 = smul.addr %s485, 4
        %s487 = scalar_lea.vmem %s6, %s486
        %p488 = pneg %p202
        %p489 = pneg %p199
        %p490 = pneg %p223
        %p491 = pneg %p220
        %p492 = pneg %p244
        %p493 = pneg %p241
        %p494 = pneg %p265
        %p495 = pneg %p262
        %p496 = pneg %p286
        %p497 = pneg %p283
        %p498 = pneg %p307
        %p499 = pneg %p304
        %p500 = pneg %p328
        %p501 = pneg %p325
        %p502 = pneg %p349
        %p503 = pneg %p346
        %p504 = pneg %p375
        %p505 = pneg %p372
        %s506 = sand.u32 %s362, 1
        %s507 = scalar_lea.sflag [#allocation8], %s506
        %s508 = sand.u32 %s362, 1
        %s509 = smul.addr %s508, 8
        %s510 = scalar_lea.vmem [#allocation7], %s509
        %p511 = scmp.lt.s32.totalorder %s32, 1
        %s512 = scalar_select %p511, %s32, 1
        %s513 = smul.addr %s512, 8
        %s514 = scalar_lea.vmem %s0, %s513
        %p515 = scmp.lt.s32.totalorder %s33, 0
        %s516 = scalar_select %p515, %s33, 0
        %s517 = smul.addr %s516, 4
        %s518 = scalar_lea.vmem %s4, %s517
        %p519 = scmp.lt.s32.totalorder %s33, 0
        %s520 = scalar_select %p519, %s33, 0
        %s521 = scalar_lea.vmem %s5, %s520
        %s522 = smul.u32 16, %s33
        %p523 = scmp.lt.s32.totalorder %s522, 15
        %s524 = scalar_select %p523, %s522, 15
        %s525 = smul.addr %s524, 4
        %s526 = scalar_lea.vmem %s6, %s525
        %s527 = smul.u32 16, %s33
        %p529 = scmp.eq.s32.totalorder %s33, 0
        // Predicated region
        $region77: #{tpu_custom_call.1} parent=75 // pred_check
          %p530 = pneg %p529
        $region78: #{tpu_custom_call.1} parent=75 // pred_check_branch
          %532 = sbr.rel (%p530) target = $region80
        $region79: #{tpu_custom_call.1} parent=75 // pred_region
          %v533 = vld [vmem:[%s514] sm:$0xff]
          %v534 = vld [vmem:[%s8] sm:$0x1]
          %v535 = vld [vmem:[%s9] sm:$0x1]
          %vm536 = vcmask 261120
          %v537 = vsel %vm536, %v533, 0.0
          %538 = vadd.xlane.f32.xlu0 %v537
          %v539 = vpop.xlane.xlu0 %538
          %v540 = vrcp.pop 32.0
          %v541 = vmul.f32 %v539, %v540
          %v542 = vsub.f32 %v533, %v541
          %v543 = vmul.f32 %v542, %v542
          %v544 = vsel %vm536, %v543, 0.0
          %545 = vadd.xlane.f32.xlu0 %v544
          %v546 = vpop.xlane.xlu0 %545
          %v547 = vmul.f32 %v546, %v540
          %v548 = vadd.f32 %v547, 1e-05
          %v549 = vrsqrt.pop %v548
          %v550 = vmul.f32 %v542, %v549
          %v552 = vlaneseq
          %v553 = vshrl.u32 %v552, 7
          %v554 = vsub.s32 0, %v553
          %v555 = vrot.slane %v534, %v554
          %v557 = vmul.f32 %v550, %v555
          %v559 = vlaneseq
          %v560 = vshrl.u32 %v559, 7
          %v561 = vsub.s32 0, %v560
          %v562 = vrot.slane %v535, %v561
          %v564 = vadd.f32 %v557, %v562
          %v565 = vpack.c.bf16 %v564, %v564
          %v566 = vld [vmem:[%s1] sm:$0xf]
          %v567 = vld [vmem:[%s1 + $0x4] sm:$0xf]
          %v568 = vld [vmem:[%s1 + $0x8] sm:$0xf]
          %v569 = vld [vmem:[%s1 + $0xc] sm:$0xf]
          %v574 = vunpack.c.l.b16 %v566
          %v575 = vunpack.c.l.b16 %v567
          %v576 = vunpack.c.l.b16 %v568
          %v577 = vunpack.c.l.b16 %v569
          %v578 = vpack.c.b16 %v575, %v574
          %v579 = vpack.c.b16 %v577, %v576
          %v583 = vsel %vm536, %v565, 0
          %585 = vmatprep.subr.bf16.mxu0 0
          %586 = vmatpush1.bf16.msra.mxu0 0
          %587 = vmatprep.subr.bf16.mxu0 0
          %588 = vmatpush1.bf16.msra.mxu0 0
          %589 = vmatprep.subr.bf16.mxu0 0
          %590 = vmatpush1.bf16.msra.mxu0 0
          %591 = vmatprep.subr.bf16.mxu0 0
          %592 = vmatpush1.bf16.msra.mxu0 0
          %593 = vmatprep.subr.bf16.mxu0 0
          %594 = vmatpush1.bf16.msra.mxu0 0
          %595 = vmatprep.subr.bf16.mxu0 0
          %596 = vmatpush1.bf16.msra.mxu0 0
          %597 = vmatprep.subr.bf16.mxu0 0
          %598 = vmatpush1.bf16.msra.mxu0 %v579
          %599 = vmatprep.subr.bf16.mxu0 0
          %600 = vmatpush1.bf16.msra.mxu0 %v578
          %601 = vmatprep.subr.bf16.mxu0 0
          %602 = vmatpush2.bf16.msra.mxu0 0
          %603 = vmatprep.subr.bf16.mxu0 0
          %604 = vmatpush2.bf16.msra.mxu0 0
          %605 = vmatprep.subr.bf16.mxu0 0
          %606 = vmatpush2.bf16.msra.mxu0 0
          %607 = vmatprep.subr.bf16.mxu0 0
          %608 = vmatpush2.bf16.msra.mxu0 0
          %609 = vmatprep.subr.bf16.mxu0 0
          %610 = vmatpush2.bf16.msra.mxu0 0
          %611 = vmatprep.subr.bf16.mxu0 0
          %612 = vmatpush2.bf16.msra.mxu0 0
          %613 = vmatprep.subr.bf16.mxu0 0
          %614 = vmatpush2.bf16.msra.mxu0 0
          %615 = vmatprep.subr.bf16.mxu0 0
          %616 = vmatpush2.bf16.msra.mxu0 0
          %617 = vmatprep.mubr.bf16.mxu0 0
          %618 = vmatmul.mubr.bf16.gmra.mxu0 %v583
          %v619 = vpop.f32.mrf.mxu0
          %v620 = vadd.f32 0.0, %v619
          %v621 = vpop.f32.mrf.mxu0
          %v622 = vpop.f32.mrf.mxu0
          %v623 = vpop.f32.mrf.mxu0
          %624 = vdwg.mxu0
          %v625 = vpack.c.bf16 %v620, %v620
          %vm626 = vcmask 781312
          %627 = vst.msk [vmem:[#allocation2] sm:$0xf] %vm626, %v625
          %v628 = vlaneseq
          %v629 = vshrl.u32 %v628, 7
          %v630 = vlaneseq
          %v631 = vand.u32 %v630, 127
          %v632 = vld [vmem:[#allocation2] sm:$0xf]
          %v634 = vunpack.c.l.b16 %v632
          %v635 = vpack.c.b16 %v634, %v634
          %636 = vrot.lane.b32.xlu0 %v635, 96
          %v637 = vpop.permute.xlu0 %636
          %vm638 = vcmask 64512
          %v640 = vsel %vm638, %v632, 0
          %v643 = vsel %vm638, %v637, 0
          %645 = vmatprep.subr.bf16.mxu0 0
          %646 = vmatpush1.bf16.xpose.msra.mxu0 0
          %647 = vmatprep.subr.bf16.mxu0 0
          %648 = vmatpush1.bf16.xpose.msra.mxu0 0
          %649 = vmatprep.subr.bf16.mxu0 0
          %650 = vmatpush1.bf16.xpose.msra.mxu0 0
          %651 = vmatprep.subr.bf16.mxu0 0
          %652 = vmatpush1.bf16.xpose.msra.mxu0 0
          %653 = vmatprep.subr.bf16.mxu0 0
          %654 = vmatpush1.bf16.xpose.msra.mxu0 0
          %655 = vmatprep.subr.bf16.mxu0 0
          %656 = vmatpush1.bf16.xpose.msra.mxu0 0
          %657 = vmatprep.subr.bf16.mxu0 0
          %658 = vmatpush1.bf16.xpose.msra.mxu0 0
          %659 = vmatprep.subr.bf16.mxu0 0
          %660 = vmatpush1.bf16.xpose.msra.mxu0 %v643
          %661 = vmatprep.subr.bf16.mxu0 0
          %662 = vmatpush2.bf16.xpose.msra.mxu0 0
          %663 = vmatprep.subr.bf16.mxu0 0
          %664 = vmatpush2.bf16.xpose.msra.mxu0 0
          %665 = vmatprep.subr.bf16.mxu0 0
          %666 = vmatpush2.bf16.xpose.msra.mxu0 0
          %667 = vmatprep.subr.bf16.mxu0 0
          %668 = vmatpush2.bf16.xpose.msra.mxu0 0
          %669 = vmatprep.subr.bf16.mxu0 0
          %670 = vmatpush2.bf16.xpose.msra.mxu0 0
          %671 = vmatprep.subr.bf16.mxu0 0
          %672 = vmatpush2.bf16.xpose.msra.mxu0 0
          %673 = vmatprep.subr.bf16.mxu0 0
          %674 = vmatpush2.bf16.xpose.msra.mxu0 0
          %675 = vmatprep.subr.bf16.mxu0 0
          %676 = vmatpush2.bf16.xpose.msra.mxu0 0
          %677 = vmatprep.mubr.bf16.mxu0 0
          %678 = vmatmul.mubr.bf16.gmra.mxu0 %v640
          %v679 = vpop.f32.mrf.mxu0
          %v680 = vadd.f32 0.0, %v679
          %v681 = vpop.f32.mrf.mxu0
          %v682 = vpop.f32.mrf.mxu0
          %v683 = vpop.f32.mrf.mxu0
          %684 = vdwg.mxu0
          %vm685 = vcmp.le.s32.totalorder %v631, %v629
          %v686 = vsel %vm685, %v680, -1e+30
          %v687 = vsel %vm638, %v686, -inf
          %688 = vmax.xlane.f32.xlu0 %v687
          %v689 = vpop.xlane.xlu0 %688
          %v690 = vsub.f32 %v686, %v689
          %v691 = vmul.f32 %v690, 1.442695
          %v692 = vpow.pop %v691
          %v693 = vsel %vm638, %v692, 0.0
          %694 = vadd.xlane.f32.xlu0 %v693
          %v695 = vpop.xlane.xlu0 %694
          %v696 = vrcp.pop %v695
          %v697 = vpack.c.bf16 %v692, %v692
          %698 = vrot.lane.b32.xlu0 %v635, 64
          %v699 = vpop.permute.xlu0 %698
          %v701 = vsel %vm638, %v697, 0
          %vm703 = vcmask 1043456
          %v705 = vsel %vm703, %v699, 0
          %707 = vmatprep.subr.bf16.mxu0 0
          %708 = vmatpush1.bf16.msra.mxu0 0
          %709 = vmatprep.subr.bf16.mxu0 0
          %710 = vmatpush1.bf16.msra.mxu0 0
          %711 = vmatprep.subr.bf16.mxu0 0
          %712 = vmatpush1.bf16.msra.mxu0 0
          %713 = vmatprep.subr.bf16.mxu0 0
          %714 = vmatpush1.bf16.msra.mxu0 0
          %715 = vmatprep.subr.bf16.mxu0 0
          %716 = vmatpush1.bf16.msra.mxu0 0
          %717 = vmatprep.subr.bf16.mxu0 0
          %718 = vmatpush1.bf16.msra.mxu0 0
          %719 = vmatprep.subr.bf16.mxu0 0
          %720 = vmatpush1.bf16.msra.mxu0 0
          %721 = vmatprep.subr.bf16.mxu0 0
          %722 = vmatpush1.bf16.msra.mxu0 %v705
          %723 = vmatprep.subr.bf16.mxu0 0
          %724 = vmatpush2.bf16.msra.mxu0 0
          %725 = vmatprep.subr.bf16.mxu0 0
          %726 = vmatpush2.bf16.msra.mxu0 0
          %727 = vmatprep.subr.bf16.mxu0 0
          %728 = vmatpush2.bf16.msra.mxu0 0
          %729 = vmatprep.subr.bf16.mxu0 0
          %730 = vmatpush2.bf16.msra.mxu0 0
          %731 = vmatprep.subr.bf16.mxu0 0
          %732 = vmatpush2.bf16.msra.mxu0 0
          %733 = vmatprep.subr.bf16.mxu0 0
          %734 = vmatpush2.bf16.msra.mxu0 0
          %735 = vmatprep.subr.bf16.mxu0 0
          %736 = vmatpush2.bf16.msra.mxu0 0
          %737 = vmatprep.subr.bf16.mxu0 0
          %738 = vmatpush2.bf16.msra.mxu0 0
          %739 = vmatprep.mubr.bf16.mxu0 0
          %740 = vmatmul.mubr.bf16.gmra.mxu0 %v701
          %v741 = vpop.f32.mrf.mxu0
          %v742 = vadd.f32 0.0, %v741
          %v743 = vpop.f32.mrf.mxu0
          %v744 = vpop.f32.mrf.mxu0
          %v745 = vpop.f32.mrf.mxu0
          %746 = vdwg.mxu0
          %v747 = vmul.f32 %v742, %v696
          %v748 = vpack.c.bf16 %v747, %v747
          %vm749 = vcmask 60416
          %750 = vst.msk [vmem:[#allocation3] sm:$0xf] %vm749, %v748
          %v751 = vld [vmem:[#allocation2] sm:$0xf]
          %v753 = vunpack.c.l.b16 %v751
          %v754 = vpack.c.b16 %v753, %v753
          %755 = vrot.lane.b32.xlu0 %v754, 120
          %v756 = vpop.permute.xlu0 %755
          %757 = vrot.lane.b32.xlu0 %v754, 88
          %v758 = vpop.permute.xlu0 %757
          %v760 = vsel %vm638, %v756, 0
          %v763 = vsel %vm638, %v758, 0
          %765 = vmatprep.subr.bf16.mxu0 0
          %766 = vmatpush1.bf16.xpose.msra.mxu0 0
          %767 = vmatprep.subr.bf16.mxu0 0
          %768 = vmatpush1.bf16.xpose.msra.mxu0 0
          %769 = vmatprep.subr.bf16.mxu0 0
          %770 = vmatpush1.bf16.xpose.msra.mxu0 0
          %771 = vmatprep.subr.bf16.mxu0 0
          %772 = vmatpush1.bf16.xpose.msra.mxu0 0
          %773 = vmatprep.subr.bf16.mxu0 0
          %774 = vmatpush1.bf16.xpose.msra.mxu0 0
          %775 = vmatprep.subr.bf16.mxu0 0
          %776 = vmatpush1.bf16.xpose.msra.mxu0 0
          %777 = vmatprep.subr.bf16.mxu0 0
          %778 = vmatpush1.bf16.xpose.msra.mxu0 0
          %779 = vmatprep.subr.bf16.mxu0 0
          %780 = vmatpush1.bf16.xpose.msra.mxu0 %v763
          %781 = vmatprep.subr.bf16.mxu0 0
          %782 = vmatpush2.bf16.xpose.msra.mxu0 0
          %783 = vmatprep.subr.bf16.mxu0 0
          %784 = vmatpush2.bf16.xpose.msra.mxu0 0
          %785 = vmatprep.subr.bf16.mxu0 0
          %786 = vmatpush2.bf16.xpose.msra.mxu0 0
          %787 = vmatprep.subr.bf16.mxu0 0
          %788 = vmatpush2.bf16.xpose.msra.mxu0 0
          %789 = vmatprep.subr.bf16.mxu0 0
          %790 = vmatpush2.bf16.xpose.msra.mxu0 0
          %791 = vmatprep.subr.bf16.mxu0 0
          %792 = vmatpush2.bf16.xpose.msra.mxu0 0
          %793 = vmatprep.subr.bf16.mxu0 0
          %794 = vmatpush2.bf16.xpose.msra.mxu0 0
          %795 = vmatprep.subr.bf16.mxu0 0
          %796 = vmatpush2.bf16.xpose.msra.mxu0 0
          %797 = vmatprep.mubr.bf16.mxu0 0
          %798 = vmatmul.mubr.bf16.gmra.mxu0 %v760
          %v799 = vpop.f32.mrf.mxu0
          %v800 = vadd.f32 0.0, %v799
          %v801 = vpop.f32.mrf.mxu0
          %v802 = vpop.f32.mrf.mxu0
          %v803 = vpop.f32.mrf.mxu0
          %804 = vdwg.mxu0
          %v805 = vsel %vm685, %v800, -1e+30
          %v806 = vsel %vm638, %v805, -inf
          %807 = vmax.xlane.f32.xlu0 %v806
          %v808 = vpop.xlane.xlu0 %807
          %v809 = vsub.f32 %v805, %v808
          %v810 = vmul.f32 %v809, 1.442695
          %v811 = vpow.pop %v810
          %v812 = vsel %vm638, %v811, 0.0
          %813 = vadd.xlane.f32.xlu0 %v812
          %v814 = vpop.xlane.xlu0 %813
          %v815 = vrcp.pop %v814
          %v816 = vpack.c.bf16 %v811, %v811
          %817 = vrot.lane.b32.xlu0 %v754, 56
          %v818 = vpop.permute.xlu0 %817
          %v820 = vsel %vm638, %v816, 0
          %v823 = vsel %vm703, %v818, 0
          %825 = vmatprep.subr.bf16.mxu0 0
          %826 = vmatpush1.bf16.msra.mxu0 0
          %827 = vmatprep.subr.bf16.mxu0 0
          %828 = vmatpush1.bf16.msra.mxu0 0
          %829 = vmatprep.subr.bf16.mxu0 0
          %830 = vmatpush1.bf16.msra.mxu0 0
          %831 = vmatprep.subr.bf16.mxu0 0
          %832 = vmatpush1.bf16.msra.mxu0 0
          %833 = vmatprep.subr.bf16.mxu0 0
          %834 = vmatpush1.bf16.msra.mxu0 0
          %835 = vmatprep.subr.bf16.mxu0 0
          %836 = vmatpush1.bf16.msra.mxu0 0
          %837 = vmatprep.subr.bf16.mxu0 0
          %838 = vmatpush1.bf16.msra.mxu0 0
          %839 = vmatprep.subr.bf16.mxu0 0
          %840 = vmatpush1.bf16.msra.mxu0 %v823
          %841 = vmatprep.subr.bf16.mxu0 0
          %842 = vmatpush2.bf16.msra.mxu0 0
          %843 = vmatprep.subr.bf16.mxu0 0
          %844 = vmatpush2.bf16.msra.mxu0 0
          %845 = vmatprep.subr.bf16.mxu0 0
          %846 = vmatpush2.bf16.msra.mxu0 0
          %847 = vmatprep.subr.bf16.mxu0 0
          %848 = vmatpush2.bf16.msra.mxu0 0
          %849 = vmatprep.subr.bf16.mxu0 0
          %850 = vmatpush2.bf16.msra.mxu0 0
          %851 = vmatprep.subr.bf16.mxu0 0
          %852 = vmatpush2.bf16.msra.mxu0 0
          %853 = vmatprep.subr.bf16.mxu0 0
          %854 = vmatpush2.bf16.msra.mxu0 0
          %855 = vmatprep.subr.bf16.mxu0 0
          %856 = vmatpush2.bf16.msra.mxu0 0
          %857 = vmatprep.mubr.bf16.mxu0 0
          %858 = vmatmul.mubr.bf16.gmra.mxu0 %v820
          %v859 = vpop.f32.mrf.mxu0
          %v860 = vadd.f32 0.0, %v859
          %v861 = vpop.f32.mrf.mxu0
          %v862 = vpop.f32.mrf.mxu0
          %v863 = vpop.f32.mrf.mxu0
          %864 = vdwg.mxu0
          %v865 = vmul.f32 %v860, %v815
          %v866 = vpack.c.bf16 %v865, %v865
          %v868 = vunpack.c.l.b16 %v866
          %v869 = vpack.c.b16 %v868, %v868
          %870 = vrot.lane.b32.xlu0 %v869, 8
          %v871 = vpop.permute.xlu0 %870
          %vm873 = vcmask 126016
          %874 = vst.msk [vmem:[#allocation3] sm:$0xf] %vm873, %v871
          %v875 = vld [vmem:[#allocation2] sm:$0xf]
          %v877 = vunpack.c.l.b16 %v875
          %v878 = vpack.c.b16 %v877, %v877
          %879 = vrot.lane.b32.xlu0 %v878, 112
          %v880 = vpop.permute.xlu0 %879
          %881 = vrot.lane.b32.xlu0 %v878, 80
          %v882 = vpop.permute.xlu0 %881
          %v884 = vsel %vm638, %v880, 0
          %v887 = vsel %vm638, %v882, 0
          %889 = vmatprep.subr.bf16.mxu0 0
          %890 = vmatpush1.bf16.xpose.msra.mxu0 0
          %891 = vmatprep.subr.bf16.mxu0 0
          %892 = vmatpush1.bf16.xpose.msra.mxu0 0
          %893 = vmatprep.subr.bf16.mxu0 0
          %894 = vmatpush1.bf16.xpose.msra.mxu0 0
          %895 = vmatprep.subr.bf16.mxu0 0
          %896 = vmatpush1.bf16.xpose.msra.mxu0 0
          %897 = vmatprep.subr.bf16.mxu0 0
          %898 = vmatpush1.bf16.xpose.msra.mxu0 0
          %899 = vmatprep.subr.bf16.mxu0 0
          %900 = vmatpush1.bf16.xpose.msra.mxu0 0
          %901 = vmatprep.subr.bf16.mxu0 0
          %902 = vmatpush1.bf16.xpose.msra.mxu0 0
          %903 = vmatprep.subr.bf16.mxu0 0
          %904 = vmatpush1.bf16.xpose.msra.mxu0 %v887
          %905 = vmatprep.subr.bf16.mxu0 0
          %906 = vmatpush2.bf16.xpose.msra.mxu0 0
          %907 = vmatprep.subr.bf16.mxu0 0
          %908 = vmatpush2.bf16.xpose.msra.mxu0 0
          %909 = vmatprep.subr.bf16.mxu0 0
          %910 = vmatpush2.bf16.xpose.msra.mxu0 0
          %911 = vmatprep.subr.bf16.mxu0 0
          %912 = vmatpush2.bf16.xpose.msra.mxu0 0
          %913 = vmatprep.subr.bf16.mxu0 0
          %914 = vmatpush2.bf16.xpose.msra.mxu0 0
          %915 = vmatprep.subr.bf16.mxu0 0
          %916 = vmatpush2.bf16.xpose.msra.mxu0 0
          %917 = vmatprep.subr.bf16.mxu0 0
          %918 = vmatpush2.bf16.xpose.msra.mxu0 0
          %919 = vmatprep.subr.bf16.mxu0 0
          %920 = vmatpush2.bf16.xpose.msra.mxu0 0
          %921 = vmatprep.mubr.bf16.mxu0 0
          %922 = vmatmul.mubr.bf16.gmra.mxu0 %v884
          %v923 = vpop.f32.mrf.mxu0
          %v924 = vadd.f32 0.0, %v923
          %v925 = vpop.f32.mrf.mxu0
          %v926 = vpop.f32.mrf.mxu0
          %v927 = vpop.f32.mrf.mxu0
          %928 = vdwg.mxu0
          %v929 = vsel %vm685, %v924, -1e+30
          %v930 = vsel %vm638, %v929, -inf
          %931 = vmax.xlane.f32.xlu0 %v930
          %v932 = vpop.xlane.xlu0 %931
          %v933 = vsub.f32 %v929, %v932
          %v934 = vmul.f32 %v933, 1.442695
          %v935 = vpow.pop %v934
          %v936 = vsel %vm638, %v935, 0.0
          %937 = vadd.xlane.f32.xlu0 %v936
          %v938 = vpop.xlane.xlu0 %937
          %v939 = vrcp.pop %v938
          %v940 = vpack.c.bf16 %v935, %v935
          %941 = vrot.lane.b32.xlu0 %v878, 48
          %v942 = vpop.permute.xlu0 %941
          %v944 = vsel %vm638, %v940, 0
          %v947 = vsel %vm703, %v942, 0
          %949 = vmatprep.subr.bf16.mxu0 0
          %950 = vmatpush1.bf16.msra.mxu0 0
          %951 = vmatprep.subr.bf16.mxu0 0
          %952 = vmatpush1.bf16.msra.mxu0 0
          %953 = vmatprep.subr.bf16.mxu0 0
          %954 = vmatpush1.bf16.msra.mxu0 0
          %955 = vmatprep.subr.bf16.mxu0 0
          %956 = vmatpush1.bf16.msra.mxu0 0
          %957 = vmatprep.subr.bf16.mxu0 0
          %958 = vmatpush1.bf16.msra.mxu0 0
          %959 = vmatprep.subr.bf16.mxu0 0
          %960 = vmatpush1.bf16.msra.mxu0 0
          %961 = vmatprep.subr.bf16.mxu0 0
          %962 = vmatpush1.bf16.msra.mxu0 0
          %963 = vmatprep.subr.bf16.mxu0 0
          %964 = vmatpush1.bf16.msra.mxu0 %v947
          %965 = vmatprep.subr.bf16.mxu0 0
          %966 = vmatpush2.bf16.msra.mxu0 0
          %967 = vmatprep.subr.bf16.mxu0 0
          %968 = vmatpush2.bf16.msra.mxu0 0
          %969 = vmatprep.subr.bf16.mxu0 0
          %970 = vmatpush2.bf16.msra.mxu0 0
          %971 = vmatprep.subr.bf16.mxu0 0
          %972 = vmatpush2.bf16.msra.mxu0 0
          %973 = vmatprep.subr.bf16.mxu0 0
          %974 = vmatpush2.bf16.msra.mxu0 0
          %975 = vmatprep.subr.bf16.mxu0 0
          %976 = vmatpush2.bf16.msra.mxu0 0
          %977 = vmatprep.subr.bf16.mxu0 0
          %978 = vmatpush2.bf16.msra.mxu0 0
          %979 = vmatprep.subr.bf16.mxu0 0
          %980 = vmatpush2.bf16.msra.mxu0 0
          %981 = vmatprep.mubr.bf16.mxu0 0
          %982 = vmatmul.mubr.bf16.gmra.mxu0 %v944
          %v983 = vpop.f32.mrf.mxu0
          %v984 = vadd.f32 0.0, %v983
          %v985 = vpop.f32.mrf.mxu0
          %v986 = vpop.f32.mrf.mxu0
          %v987 = vpop.f32.mrf.mxu0
          %988 = vdwg.mxu0
          %v989 = vmul.f32 %v984, %v939
          %v990 = vpack.c.bf16 %v989, %v989
          %v992 = vunpack.c.l.b16 %v990
          %v993 = vpack.c.b16 %v992, %v992
          %994 = vrot.lane.b32.xlu0 %v993, 16
          %v995 = vpop.permute.xlu0 %994
          %vm997 = vcmask 191616
          %998 = vst.msk [vmem:[#allocation3] sm:$0xf] %vm997, %v995
          %v999 = vld [vmem:[#allocation2] sm:$0xf]
          %v1001 = vunpack.c.l.b16 %v999
          %v1002 = vpack.c.b16 %v1001, %v1001
          %1003 = vrot.lane.b32.xlu0 %v1002, 104
          %v1004 = vpop.permute.xlu0 %1003
          %1005 = vrot.lane.b32.xlu0 %v1002, 72
          %v1006 = vpop.permute.xlu0 %1005
          %v1008 = vsel %vm638, %v1004, 0
          %v1011 = vsel %vm638, %v1006, 0
          %1013 = vmatprep.subr.bf16.mxu0 0
          %1014 = vmatpush1.bf16.xpose.msra.mxu0 0
          %1015 = vmatprep.subr.bf16.mxu0 0
          %1016 = vmatpush1.bf16.xpose.msra.mxu0 0
          %1017 = vmatprep.subr.bf16.mxu0 0
          %1018 = vmatpush1.bf16.xpose.msra.mxu0 0
          %1019 = vmatprep.subr.bf16.mxu0 0
          %1020 = vmatpush1.bf16.xpose.msra.mxu0 0
          %1021 = vmatprep.subr.bf16.mxu0 0
          %1022 = vmatpush1.bf16.xpose.msra.mxu0 0
          %1023 = vmatprep.subr.bf16.mxu0 0
          %1024 = vmatpush1.bf16.xpose.msra.mxu0 0
          %1025 = vmatprep.subr.bf16.mxu0 0
          %1026 = vmatpush1.bf16.xpose.msra.mxu0 0
          %1027 = vmatprep.subr.bf16.mxu0 0
          %1028 = vmatpush1.bf16.xpose.msra.mxu0 %v1011
          %1029 = vmatprep.subr.bf16.mxu0 0
          %1030 = vmatpush2.bf16.xpose.msra.mxu0 0
          %1031 = vmatprep.subr.bf16.mxu0 0
          %1032 = vmatpush2.bf16.xpose.msra.mxu0 0
          %1033 = vmatprep.subr.bf16.mxu0 0
          %1034 = vmatpush2.bf16.xpose.msra.mxu0 0
          %1035 = vmatprep.subr.bf16.mxu0 0
          %1036 = vmatpush2.bf16.xpose.msra.mxu0 0
          %1037 = vmatprep.subr.bf16.mxu0 0
          %1038 = vmatpush2.bf16.xpose.msra.mxu0 0
          %1039 = vmatprep.subr.bf16.mxu0 0
          %1040 = vmatpush2.bf16.xpose.msra.mxu0 0
          %1041 = vmatprep.subr.bf16.mxu0 0
          %1042 = vmatpush2.bf16.xpose.msra.mxu0 0
          %1043 = vmatprep.subr.bf16.mxu0 0
          %1044 = vmatpush2.bf16.xpose.msra.mxu0 0
          %1045 = vmatprep.mubr.bf16.mxu0 0
          %1046 = vmatmul.mubr.bf16.gmra.mxu0 %v1008
          %v1047 = vpop.f32.mrf.mxu0
          %v1048 = vadd.f32 0.0, %v1047
          %v1049 = vpop.f32.mrf.mxu0
          %v1050 = vpop.f32.mrf.mxu0
          %v1051 = vpop.f32.mrf.mxu0
          %1052 = vdwg.mxu0
          %v1053 = vsel %vm685, %v1048, -1e+30
          %v1054 = vsel %vm638, %v1053, -inf
          %1055 = vmax.xlane.f32.xlu0 %v1054
          %v1056 = vpop.xlane.xlu0 %1055
          %v1057 = vsub.f32 %v1053, %v1056
          %v1058 = vmul.f32 %v1057, 1.442695
          %v1059 = vpow.pop %v1058
          %v1060 = vsel %vm638, %v1059, 0.0
          %1061 = vadd.xlane.f32.xlu0 %v1060
          %v1062 = vpop.xlane.xlu0 %1061
          %v1063 = vrcp.pop %v1062
          %v1064 = vpack.c.bf16 %v1059, %v1059
          %1065 = vrot.lane.b32.xlu0 %v1002, 40
          %v1066 = vpop.permute.xlu0 %1065
          %v1068 = vsel %vm638, %v1064, 0
          %v1071 = vsel %vm703, %v1066, 0
          %1073 = vmatprep.subr.bf16.mxu0 0
          %1074 = vmatpush1.bf16.msra.mxu0 0
          %1075 = vmatprep.subr.bf16.mxu0 0
          %1076 = vmatpush1.bf16.msra.mxu0 0
          %1077 = vmatprep.subr.bf16.mxu0 0
          %1078 = vmatpush1.bf16.msra.mxu0 0
          %1079 = vmatprep.subr.bf16.mxu0 0
          %1080 = vmatpush1.bf16.msra.mxu0 0
          %1081 = vmatprep.subr.bf16.mxu0 0
          %1082 = vmatpush1.bf16.msra.mxu0 0
          %1083 = vmatprep.subr.bf16.mxu0 0
          %1084 = vmatpush1.bf16.msra.mxu0 0
          %1085 = vmatprep.subr.bf16.mxu0 0
          %1086 = vmatpush1.bf16.msra.mxu0 0
          %1087 = vmatprep.subr.bf16.mxu0 0
          %1088 = vmatpush1.bf16.msra.mxu0 %v1071
          %1089 = vmatprep.subr.bf16.mxu0 0
          %1090 = vmatpush2.bf16.msra.mxu0 0
          %1091 = vmatprep.subr.bf16.mxu0 0
          %1092 = vmatpush2.bf16.msra.mxu0 0
          %1093 = vmatprep.subr.bf16.mxu0 0
          %1094 = vmatpush2.bf16.msra.mxu0 0
          %1095 = vmatprep.subr.bf16.mxu0 0
          %1096 = vmatpush2.bf16.msra.mxu0 0
          %1097 = vmatprep.subr.bf16.mxu0 0
          %1098 = vmatpush2.bf16.msra.mxu0 0
          %1099 = vmatprep.subr.bf16.mxu0 0
          %1100 = vmatpush2.bf16.msra.mxu0 0
          %1101 = vmatprep.subr.bf16.mxu0 0
          %1102 = vmatpush2.bf16.msra.mxu0 0
          %1103 = vmatprep.subr.bf16.mxu0 0
          %1104 = vmatpush2.bf16.msra.mxu0 0
          %1105 = vmatprep.mubr.bf16.mxu0 0
          %1106 = vmatmul.mubr.bf16.gmra.mxu0 %v1068
          %v1107 = vpop.f32.mrf.mxu0
          %v1108 = vadd.f32 0.0, %v1107
          %v1109 = vpop.f32.mrf.mxu0
          %v1110 = vpop.f32.mrf.mxu0
          %v1111 = vpop.f32.mrf.mxu0
          %1112 = vdwg.mxu0
          %v1113 = vmul.f32 %v1108, %v1063
          %v1114 = vpack.c.bf16 %v1113, %v1113
          %v1116 = vunpack.c.l.b16 %v1114
          %v1117 = vpack.c.b16 %v1116, %v1116
          %1118 = vrot.lane.b32.xlu0 %v1117, 24
          %v1119 = vpop.permute.xlu0 %1118
          %vm1121 = vcmask 257216
          %1122 = vst.msk [vmem:[#allocation3] sm:$0xf] %vm1121, %v1119
          %v1123 = vld [vmem:[#allocation3] sm:$0xf]
          %v1124 = vld [vmem:[%s2] sm:$0xf]
          %v1125 = vld [vmem:[%s2 + $0x4] sm:$0xf]
          %v1126 = vld [vmem:[%s2 + $0x8] sm:$0xf]
          %v1127 = vld [vmem:[%s2 + $0xc] sm:$0xf]
          %v1132 = vunpack.c.l.b16 %v1124
          %v1133 = vunpack.c.l.b16 %v1125
          %v1134 = vunpack.c.l.b16 %v1126
          %v1135 = vunpack.c.l.b16 %v1127
          %v1136 = vpack.c.b16 %v1133, %v1132
          %v1137 = vpack.c.b16 %v1135, %v1134
          %v1141 = vsel %vm536, %v1123, 0
          %1143 = vmatprep.subr.bf16.mxu0 0
          %1144 = vmatpush1.bf16.msra.mxu0 0
          %1145 = vmatprep.subr.bf16.mxu0 0
          %1146 = vmatpush1.bf16.msra.mxu0 0
          %1147 = vmatprep.subr.bf16.mxu0 0
          %1148 = vmatpush1.bf16.msra.mxu0 0
          %1149 = vmatprep.subr.bf16.mxu0 0
          %1150 = vmatpush1.bf16.msra.mxu0 0
          %1151 = vmatprep.subr.bf16.mxu0 0
          %1152 = vmatpush1.bf16.msra.mxu0 0
          %1153 = vmatprep.subr.bf16.mxu0 0
          %1154 = vmatpush1.bf16.msra.mxu0 0
          %1155 = vmatprep.subr.bf16.mxu0 0
          %1156 = vmatpush1.bf16.msra.mxu0 %v1137
          %1157 = vmatprep.subr.bf16.mxu0 0
          %1158 = vmatpush1.bf16.msra.mxu0 %v1136
          %1159 = vmatprep.subr.bf16.mxu0 0
          %1160 = vmatpush2.bf16.msra.mxu0 0
          %1161 = vmatprep.subr.bf16.mxu0 0
          %1162 = vmatpush2.bf16.msra.mxu0 0
          %1163 = vmatprep.subr.bf16.mxu0 0
          %1164 = vmatpush2.bf16.msra.mxu0 0
          %1165 = vmatprep.subr.bf16.mxu0 0
          %1166 = vmatpush2.bf16.msra.mxu0 0
          %1167 = vmatprep.subr.bf16.mxu0 0
          %1168 = vmatpush2.bf16.msra.mxu0 0
          %1169 = vmatprep.subr.bf16.mxu0 0
          %1170 = vmatpush2.bf16.msra.mxu0 0
          %1171 = vmatprep.subr.bf16.mxu0 0
          %1172 = vmatpush2.bf16.msra.mxu0 0
          %1173 = vmatprep.subr.bf16.mxu0 0
          %1174 = vmatpush2.bf16.msra.mxu0 0
          %1175 = vmatprep.mubr.bf16.mxu0 0
          %1176 = vmatmul.mubr.bf16.gmra.mxu0 %v1141
          %v1177 = vpop.f32.mrf.mxu0
          %v1178 = vadd.f32 0.0, %v1177
          %v1179 = vpop.f32.mrf.mxu0
          %v1180 = vpop.f32.mrf.mxu0
          %v1181 = vpop.f32.mrf.mxu0
          %1182 = vdwg.mxu0
          %v1183 = vadd.f32 %v533, %v1178
          %v1184 = vld [vmem:[%s3] sm:$0x1]
          %v1186 = vlaneseq
          %v1187 = vshrl.u32 %v1186, 7
          %v1188 = vsub.s32 0, %v1187
          %v1189 = vrot.slane %v1184, %v1188
          %v1191 = vadd.f32 %v1183, %v1189
          %1192 = vst.msk [vmem:[#allocation4] sm:$0xff] %vm536, %v1191
          %v1193 = vld [vmem:[%s10] sm:$0x1]
          %v1194 = vld [vmem:[%s11] sm:$0x1]
          %v1195 = vsel %vm536, %v1191, 0.0
          %1196 = vadd.xlane.f32.xlu0 %v1195
          %v1197 = vpop.xlane.xlu0 %1196
          %v1198 = vmul.f32 %v1197, %v540
          %v1199 = vsub.f32 %v1191, %v1198
          %v1200 = vmul.f32 %v1199, %v1199
          %v1201 = vsel %vm536, %v1200, 0.0
          %1202 = vadd.xlane.f32.xlu0 %v1201
          %v1203 = vpop.xlane.xlu0 %1202
          %v1204 = vmul.f32 %v1203, %v540
          %v1205 = vadd.f32 %v1204, 1e-05
          %v1206 = vrsqrt.pop %v1205
          %v1207 = vmul.f32 %v1199, %v1206
          %v1209 = vlaneseq
          %v1210 = vshrl.u32 %v1209, 7
          %v1211 = vsub.s32 0, %v1210
          %v1212 = vrot.slane %v1193, %v1211
          %v1214 = vmul.f32 %v1207, %v1212
          %v1216 = vlaneseq
          %v1217 = vshrl.u32 %v1216, 7
          %v1218 = vsub.s32 0, %v1217
          %v1219 = vrot.slane %v1194, %v1218
          %v1221 = vadd.f32 %v1214, %v1219
          %v1222 = vpack.c.bf16 %v1221, %v1221
          %vm1223 = vcmask 257024
          %1224 = vst.msk [vmem:[#allocation5] sm:$0xf] %vm1223, %v1222
          %1225 = vst.msk [vmem:[#allocation6] sm:$0xff] %vm536, 0.0
        $region80: #{tpu_custom_call.1} parent=75 // pred_fallthru
          _
        %v1226 = vld [vmem:[#allocation5] sm:$0xf]
        %v1227 = vld [vmem:[%s518] sm:$0xf]
        %v1228 = vld [vmem:[%s518 + $0x4] sm:$0xf]
        %v1229 = vld [vmem:[%s518 + $0x8] sm:$0xf]
        %v1230 = vld [vmem:[%s518 + $0xc] sm:$0xf]
        %v1231 = vld [vmem:[%s521] sm:$0x1]
        %v1233 = vlaneseq
        %v1234 = vshrl.u32 %v1233, 7
        %v1235 = vsub.s32 0, %v1234
        %v1236 = vrot.slane %v1231, %v1235
        %v1242 = vunpack.c.l.b16 %v1227
        %v1243 = vunpack.c.l.b16 %v1228
        %v1244 = vunpack.c.l.b16 %v1229
        %v1245 = vunpack.c.l.b16 %v1230
        %v1246 = vpack.c.b16 %v1243, %v1242
        %v1247 = vpack.c.b16 %v1245, %v1244
        %vm1250 = vcmask 261120
        %v1252 = vsel %vm1250, %v1226, 0
        %1254 = vmatprep.subr.bf16.mxu0 0
        %1255 = vmatpush1.bf16.msra.mxu0 0
        %1256 = vmatprep.subr.bf16.mxu0 0
        %1257 = vmatpush1.bf16.msra.mxu0 0
        %1258 = vmatprep.subr.bf16.mxu0 0
        %1259 = vmatpush1.bf16.msra.mxu0 0
        %1260 = vmatprep.subr.bf16.mxu0 0
        %1261 = vmatpush1.bf16.msra.mxu0 0
        %1262 = vmatprep.subr.bf16.mxu0 0
        %1263 = vmatpush1.bf16.msra.mxu0 0
        %1264 = vmatprep.subr.bf16.mxu0 0
        %1265 = vmatpush1.bf16.msra.mxu0 0
        %1266 = vmatprep.subr.bf16.mxu0 0
        %1267 = vmatpush1.bf16.msra.mxu0 %v1247
        %1268 = vmatprep.subr.bf16.mxu0 0
        %1269 = vmatpush1.bf16.msra.mxu0 %v1246
        %1270 = vmatprep.subr.bf16.mxu0 0
        %1271 = vmatpush2.bf16.msra.mxu0 0
        %1272 = vmatprep.subr.bf16.mxu0 0
        %1273 = vmatpush2.bf16.msra.mxu0 0
        %1274 = vmatprep.subr.bf16.mxu0 0
        %1275 = vmatpush2.bf16.msra.mxu0 0
        %1276 = vmatprep.subr.bf16.mxu0 0
        %1277 = vmatpush2.bf16.msra.mxu0 0
        %1278 = vmatprep.subr.bf16.mxu0 0
        %1279 = vmatpush2.bf16.msra.mxu0 0
        %1280 = vmatprep.subr.bf16.mxu0 0
        %1281 = vmatpush2.bf16.msra.mxu0 0
        %1282 = vmatprep.subr.bf16.mxu0 0
        %1283 = vmatpush2.bf16.msra.mxu0 0
        %1284 = vmatprep.subr.bf16.mxu0 0
        %1285 = vmatpush2.bf16.msra.mxu0 0
        %1286 = vmatprep.mubr.bf16.mxu0 0
        %1287 = vmatmul.mubr.bf16.gmra.mxu0 %v1252
        %v1288 = vpop.f32.mrf.mxu0
        %v1289 = vadd.f32 %v1236, %v1288
        %v1290 = vpop.f32.mrf.mxu0
        %v1291 = vpop.f32.mrf.mxu0
        %v1292 = vpop.f32.mrf.mxu0
        %1293 = vdwg.mxu0
        %v1294 = vmax.f32 %v1289, 0.0
        %v1295 = vpack.c.bf16 %v1294, %v1294
        %v1296 = vld [vmem:[#allocation6] sm:$0xff]
        %v1297 = vld [vmem:[%s526] sm:$0xf]
        %v1298 = vld [vmem:[%s526 + $0x4] sm:$0xf]
        %v1299 = vld [vmem:[%s526 + $0x8] sm:$0xf]
        %v1300 = vld [vmem:[%s526 + $0xc] sm:$0xf]
        %v1301 = vld [vmem:[%s526 + $0x10] sm:$0xf]
        %v1302 = vld [vmem:[%s526 + $0x14] sm:$0xf]
        %v1303 = vld [vmem:[%s526 + $0x18] sm:$0xf]
        %v1304 = vld [vmem:[%s526 + $0x1c] sm:$0xf]
        %v1305 = vld [vmem:[%s526 + $0x20] sm:$0xf]
        %v1306 = vld [vmem:[%s526 + $0x24] sm:$0xf]
        %v1307 = vld [vmem:[%s526 + $0x28] sm:$0xf]
        %v1308 = vld [vmem:[%s526 + $0x2c] sm:$0xf]
        %v1309 = vld [vmem:[%s526 + $0x30] sm:$0xf]
        %v1310 = vld [vmem:[%s526 + $0x34] sm:$0xf]
        %v1311 = vld [vmem:[%s526 + $0x38] sm:$0xf]
        %v1312 = vld [vmem:[%s526 + $0x3c] sm:$0xf]
        %v1329 = vunpack.c.l.b16 %v1297
        %v1330 = vunpack.c.l.b16 %v1298
        %v1331 = vunpack.c.l.b16 %v1299
        %v1332 = vunpack.c.l.b16 %v1300
        %v1333 = vunpack.c.l.b16 %v1301
        %v1334 = vunpack.c.l.b16 %v1302
        %v1335 = vunpack.c.l.b16 %v1303
        %v1336 = vunpack.c.l.b16 %v1304
        %v1337 = vunpack.c.l.b16 %v1305
        %v1338 = vunpack.c.l.b16 %v1306
        %v1339 = vunpack.c.l.b16 %v1307
        %v1340 = vunpack.c.l.b16 %v1308
        %v1341 = vunpack.c.l.b16 %v1309
        %v1342 = vunpack.c.l.b16 %v1310
        %v1343 = vunpack.c.l.b16 %v1311
        %v1344 = vunpack.c.l.b16 %v1312
        %v1345 = vpack.c.b16 %v1330, %v1329
        %v1346 = vpack.c.b16 %v1332, %v1331
        %v1347 = vpack.c.b16 %v1334, %v1333
        %v1348 = vpack.c.b16 %v1336, %v1335
        %v1349 = vpack.c.b16 %v1338, %v1337
        %v1350 = vpack.c.b16 %v1340, %v1339
        %v1351 = vpack.c.b16 %v1342, %v1341
        %v1352 = vpack.c.b16 %v1344, %v1343
        %1361 = vmatprep.subr.bf16.mxu0 0
        %1362 = vmatpush1.bf16.msra.mxu0 %v1352
        %1363 = vmatprep.subr.bf16.mxu0 0
        %1364 = vmatpush1.bf16.msra.mxu0 %v1351
        %1365 = vmatprep.subr.bf16.mxu0 0
        %1366 = vmatpush1.bf16.msra.mxu0 %v1350
        %1367 = vmatprep.subr.bf16.mxu0 0
        %1368 = vmatpush1.bf16.msra.mxu0 %v1349
        %1369 = vmatprep.subr.bf16.mxu0 0
        %1370 = vmatpush1.bf16.msra.mxu0 %v1348
        %1371 = vmatprep.subr.bf16.mxu0 0
        %1372 = vmatpush1.bf16.msra.mxu0 %v1347
        %1373 = vmatprep.subr.bf16.mxu0 0
        %1374 = vmatpush1.bf16.msra.mxu0 %v1346
        %1375 = vmatprep.subr.bf16.mxu0 0
        %1376 = vmatpush1.bf16.msra.mxu0 %v1345
        %1377 = vmatprep.subr.bf16.mxu0 0
        %1378 = vmatpush2.bf16.msra.mxu0 0
        %1379 = vmatprep.subr.bf16.mxu0 0
        %1380 = vmatpush2.bf16.msra.mxu0 0
        %1381 = vmatprep.subr.bf16.mxu0 0
        %1382 = vmatpush2.bf16.msra.mxu0 0
        %1383 = vmatprep.subr.bf16.mxu0 0
        %1384 = vmatpush2.bf16.msra.mxu0 0
        %1385 = vmatprep.subr.bf16.mxu0 0
        %1386 = vmatpush2.bf16.msra.mxu0 0
        %1387 = vmatprep.subr.bf16.mxu0 0
        %1388 = vmatpush2.bf16.msra.mxu0 0
        %1389 = vmatprep.subr.bf16.mxu0 0
        %1390 = vmatpush2.bf16.msra.mxu0 0
        %1391 = vmatprep.subr.bf16.mxu0 0
        %1392 = vmatpush2.bf16.msra.mxu0 0
        %1393 = vmatprep.mubr.bf16.mxu0 0
        %1394 = vmatmul.mubr.bf16.gmra.mxu0 %v1295
        %v1395 = vpop.f32.mrf.mxu0
        %v1396 = vadd.f32 0.0, %v1395
        %v1397 = vpop.f32.mrf.mxu0
        %v1398 = vpop.f32.mrf.mxu0
        %v1399 = vpop.f32.mrf.mxu0
        %1400 = vdwg.mxu0
        %v1401 = vadd.f32 %v1296, %v1396
        %1402 = vst.msk [vmem:[#allocation6] sm:$0xff] %vm1250, %v1401
        // Predicated region
        $region81: #{tpu_custom_call.1} parent=75 // pred_check
          %p1403 = pneg %p529
        $region82: #{tpu_custom_call.1} parent=75 // pred_check_branch
          %1405 = sbr.rel (%p1403) target = $region84
        $region83: #{tpu_custom_call.1} parent=75 // pred_region
          %v1406 = vld [vmem:[#allocation4] sm:$0xff]
          %v1407 = vld [vmem:[#allocation6] sm:$0xff]
          %v1408 = vadd.f32 %v1406, %v1407
          %v1409 = vld [vmem:[%s7] sm:$0x1]
          %v1411 = vlaneseq
          %v1412 = vshrl.u32 %v1411, 7
          %v1413 = vsub.s32 0, %v1412
          %v1414 = vrot.slane %v1409, %v1413
          %v1416 = vadd.f32 %v1408, %v1414
          %v1417 = vld [vmem:[%s12] sm:$0x1]
          %v1418 = vld [vmem:[%s13] sm:$0x1]
          %v1419 = vsel %vm1250, %v1416, 0.0
          %1420 = vadd.xlane.f32.xlu0 %v1419
          %v1421 = vpop.xlane.xlu0 %1420
          %v1422 = vrcp.pop 32.0
          %v1423 = vmul.f32 %v1421, %v1422
          %v1424 = vsub.f32 %v1416, %v1423
          %v1425 = vmul.f32 %v1424, %v1424
          %v1426 = vsel %vm1250, %v1425, 0.0
          %1427 = vadd.xlane.f32.xlu0 %v1426
          %v1428 = vpop.xlane.xlu0 %1427
          %v1429 = vmul.f32 %v1428, %v1422
          %v1430 = vadd.f32 %v1429, 1e-05
          %v1431 = vrsqrt.pop %v1430
          %v1432 = vmul.f32 %v1424, %v1431
          %v1434 = vlaneseq
          %v1435 = vshrl.u32 %v1434, 7
          %v1436 = vsub.s32 0, %v1435
          %v1437 = vrot.slane %v1417, %v1436
          %v1439 = vmul.f32 %v1432, %v1437
          %v1441 = vlaneseq
          %v1442 = vshrl.u32 %v1441, 7
          %v1443 = vsub.s32 0, %v1442
          %v1444 = vrot.slane %v1418, %v1443
          %v1446 = vadd.f32 %v1439, %v1444
          %1447 = vst.msk [vmem:[%s510] sm:$0xff] %vm1250, %v1446
        $region84: #{tpu_custom_call.1} parent=75 // pred_fallthru
          _
        %s1448 = sand.u32 %s362, 1
        %s1449 = scalar_lea.sflag [#allocation8], %s1448
        %s1450 = sand.u32 %s362, 1
        %s1451 = smul.addr %s1450, 8
        %s1452 = scalar_lea.vmem [#allocation7], %s1451
        // Predicated region
        $region85: #{tpu_custom_call.1} parent=75 // pred_check
          %p1453 = pneg %p372
        $region86: #{tpu_custom_call.1} parent=75 // pred_check_branch
          %1455 = sbr.rel (%p1453) target = $region88
        $region87: #{tpu_custom_call.1} parent=75 // pred_region
          %s1457 = ssub.s32 128, 128
          %1458 = vsyncadd %s1449, %s1457
          %s1459 = smul.addr %s32, 128
          %s1460 = scalar_lea.hbm %s14, %s1459
          %s1462 = sshll.u32 %s1452, 4
          %s1463 = int_to_ptr.vmem [resolvable:$true] %s1462
          %1465 = dma.vmem_to_hbm [thread:$0]  %s1463, 128, %s1460, %s1449
        $region88: #{tpu_custom_call.1} parent=75 // pred_fallthru
          _
      $region76: #{tpu_custom_call.1} parent=5 // pred_fallthru
        _
      %p1466 = scmp.le.s32.totalorder 2, %s23
      // Predicated region
      $region89: #{tpu_custom_call.1} parent=5 // pred_check
        %p1467 = pneg %p1466
      $region90: #{tpu_custom_call.1} parent=5 // pred_check_branch
        %1469 = sbr.rel (%p1467) target = $region92
      $region91: #{tpu_custom_call.1} parent=5 // pred_region
        %s1470 = ssub.s32 %s23, 2
        // Predicated region
        $region93: #{tpu_custom_call.1} parent=91 // pred_check
          %p1471 = pneg %p378
        $region94: #{tpu_custom_call.1} parent=91 // pred_check_branch
          %1473 = sbr.rel (%p1471) target = $region96
        $region95: #{tpu_custom_call.1} parent=91 // pred_region
          %s1474 = sand.u32 %s363, 1
          %s1475 = scalar_lea.sflag [#allocation8], %s1474
          %s1476 = sand.u32 %s363, 1
          %s1477 = smul.addr %s1476, 8
          %s1478 = scalar_lea.vmem [#allocation7], %s1477
          %1479 = dma.done %s1475, 128
        $region96: #{tpu_custom_call.1} parent=91 // pred_fallthru
          _
      $region92: #{tpu_custom_call.1} parent=5 // pred_fallthru
        _
    $region6: #{tpu_custom_call.1} parent=1 // loop_footer
      %s27 = sadd.s32 1, %s23
    $region7: #{tpu_custom_call.1} parent=1 // loop_footer_branch
      %22 = sbr.rel target = $region3
    $region8: #{tpu_custom_call.1} parent=1 // loop_exit
      _
    %1480 = vsyncpa [#allocation8], 1
    %s1481 = scalar_lea.sflag [#allocation8], 1
    %1482 = vsyncpa %s1481, 1

</llo_original>
